<compile_context>
chip_gen: v7x
topology: tpu7x:2x2x1
jax: 0.10.0
libtpu: 0.0.40
codegen_flags: <defaults>
</compile_context>

<pallas_src>
import functools
import math

import jax
import jax.numpy as jnp
from jax.experimental import pallas as pl
from jax.experimental.pallas import tpu as pltpu

_BN_EPS = 1e-5
_ACT_DTYPE = jnp.bfloat16
_CONV_TILE_PIXELS = 512      # target flat output pixels per conv3x3 grid step

_VMEM_LIMIT = 64 * 1024 * 1024
_CP1 = pltpu.CompilerParams(dimension_semantics=("parallel",),
                            vmem_limit_bytes=_VMEM_LIMIT)
_CP2 = pltpu.CompilerParams(dimension_semantics=("parallel", "parallel"),
                            vmem_limit_bytes=_VMEM_LIMIT)


def _round_up(n, m):
    return (n + m - 1) // m * m


def _cdiv(a, b):
    return -(-a // b)


# ----------------------------------------------------------------------------
# Pallas kernels
# ----------------------------------------------------------------------------
def _mm_affine_kernel(x_ref, w_ref, s_ref, b_ref, o_ref, *, relu):
    # o = act((x @ w) * scale + shift) ; bf16 operands, f32 accumulation.
    acc = jnp.dot(x_ref[...], w_ref[...], preferred_element_type=jnp.float32)
    y = acc * s_ref[...] + b_ref[...]
    if relu:
        y = jnp.maximum(y, 0.0)
    o_ref[...] = y.astype(o_ref.dtype)


def _conv3x3_kernel(x_ref, w_ref, s_ref, b_ref, o_ref, *, relu, th, wo):
    # Fused 3x3 stride-1 conv over a row-band: 9 big (th*wo, C)@(C, O) matmuls
    # (one per tap) into a single f32 accumulator, then one fused affine/ReLU
    # epilogue and one store.
    C = x_ref.shape[-1]
    O = o_ref.shape[-1]
    h0 = pl.program_id(1) * th
    acc = jnp.zeros((th * wo, O), jnp.float32)
    for i in range(3):
        for j in range(3):
            lhs = x_ref[0, pl.ds(h0 + i, th), pl.ds(j, wo), :].reshape(th * wo, C)
            acc = acc + jnp.dot(lhs, w_ref[i * 3 + j],
                                preferred_element_type=jnp.float32)
    y = acc * s_ref[...] + b_ref[...]
    if relu:
        y = jnp.maximum(y, 0.0)
    o_ref[0] = y.reshape(th, wo, O).astype(o_ref.dtype)


def _conv3x3_res_kernel(x_ref, w_ref, s_ref, b_ref, r_ref, o_ref, *, relu, th, wo):
    # Same as above + fused residual add (BasicResnetBlock second conv).
    C = x_ref.shape[-1]
    O = o_ref.shape[-1]
    h0 = pl.program_id(1) * th
    acc = jnp.zeros((th * wo, O), jnp.float32)
    for i in range(3):
        for j in range(3):
            lhs = x_ref[0, pl.ds(h0 + i, th), pl.ds(j, wo), :].reshape(th * wo, C)
            acc = acc + jnp.dot(lhs, w_ref[i * 3 + j],
                                preferred_element_type=jnp.float32)
    y = (acc * s_ref[...] + b_ref[...]
         + r_ref[0].reshape(th * wo, O).astype(jnp.float32))
    if relu:
        y = jnp.maximum(y, 0.0)
    o_ref[0] = y.reshape(th, wo, O).astype(o_ref.dtype)


def _add5_kernel(a_ref, b_ref, c_ref, d_ref, e_ref, o_ref):
    y = (a_ref[...].astype(jnp.float32) + b_ref[...].astype(jnp.float32)
         + c_ref[...].astype(jnp.float32) + d_ref[...].astype(jnp.float32)
         + e_ref[...].astype(jnp.float32))
    o_ref[...] = y.astype(o_ref.dtype)


def _up_add_dual_kernel(u_ref, a_ref, b_ref, o1_ref, o2_ref):
    # out1 = up1 + upsample2x(low3_1), out2 = up1 + upsample2x(low3_2).
    # up1 / outputs are viewed as (2*Hl, Wl, 2C): W-duplication is a lane-dim
    # concat, H-duplication a broadcast + leading-dim reshape.  Fully
    # vectorized: no per-row loops, one store per output per tile.
    hb = a_ref.shape[1]
    Wl = a_ref.shape[2]
    C2 = u_ref.shape[3]
    u = u_ref[0].astype(jnp.float32)                         # (2hb, Wl, 2C)

    def upsample2x(v):
        vw = jnp.concatenate([v, v], axis=-1)                # (hb, Wl, 2C)
        return jnp.broadcast_to(vw[:, None], (hb, 2, Wl, C2)).reshape(2 * hb, Wl, C2)

    a = upsample2x(a_ref[0].astype(jnp.float32))
    b = upsample2x(b_ref[0].astype(jnp.float32))
    o1_ref[0] = (u + a).astype(o1_ref.dtype)
    o2_ref[0] = (u + b).astype(o2_ref.dtype)


# ----------------------------------------------------------------------------
# Pallas call wrappers
# ----------------------------------------------------------------------------
@functools.partial(jax.jit, static_argnames=("relu",))
def _matmul_affine(x, w, scale, shift, *, relu):
    M, K = x.shape
    N = w.shape[1]
    # lane-dense output for tiny channel counts (score heads etc.)
    Np = N if (N % 128 == 0 or N >= 64) else _round_up(N, 128)
    if Np != N:
        w = jnp.pad(w, ((0, 0), (0, Np - N)))
        scale = jnp.pad(scale, (0, Np - N))
        shift = jnp.pad(shift, (0, Np - N))
    tm = M if M <= 1024 else 1024
    out = pl.pallas_call(
        functools.partial(_mm_affine_kernel, relu=relu),
        out_shape=jax.ShapeDtypeStruct((M, Np), _ACT_DTYPE),
        grid=(pl.cdiv(M, tm),),
        in_specs=[
            pl.BlockSpec((tm, K), lambda i: (i, 0)),
            pl.BlockSpec((K, Np), lambda i: (0, 0)),
            pl.BlockSpec((1, Np), lambda i: (0, 0)),
            pl.BlockSpec((1, Np), lambda i: (0, 0)),
        ],
        out_specs=pl.BlockSpec((tm, Np), lambda i: (i, 0)),
        compiler_params=_CP1,
    )(x.astype(jnp.bfloat16), w.astype(jnp.bfloat16),
      scale.reshape(1, Np).astype(jnp.float32),
      shift.reshape(1, Np).astype(jnp.float32))
    return out[:, :N] if Np != N else out


@functools.partial(jax.jit, static_argnames=("relu", "has_res", "padding"))
def _conv3x3_call(x, w9, scale, shift, residual, *, relu, has_res, padding):
    # x: (N, H, W, C) activations; w9: (9, C, O); 3x3 stride-1 conv, pad={0,1}.
    N, H, W, C = x.shape
    O = w9.shape[-1]
    p = padding
    Ho, Wo = H + 2 * p - 2, W + 2 * p - 2
    wo = _round_up(Wo, 8)
    wp = wo + 2
    th = max(1, min(Ho, max(1, _CONV_TILE_PIXELS // wo)))
    T = _cdiv(Ho, th)
    hp = T * th + 2
    xp = jnp.pad(x, ((0, 0), (p, hp - H - p), (p, wp - W - p), (0, 0)))

    args = [xp.astype(jnp.bfloat16), w9.astype(jnp.bfloat16),
            scale.reshape(1, O).astype(jnp.float32),
            shift.reshape(1, O).astype(jnp.float32)]
    in_specs = [
        pl.BlockSpec((1, hp, wp, C), lambda n, t: (n, 0, 0, 0)),  # padded image
        pl.BlockSpec((9, C, O), lambda n, t: (0, 0, 0)),          # resident weights
        pl.BlockSpec((1, O), lambda n, t: (0, 0)),
        pl.BlockSpec((1, O), lambda n, t: (0, 0)),
    ]
    if has_res:
        r = residual
        if wo != Wo:  # only for tiny / odd widths; no-op for power-of-two maps
            r = jnp.pad(r, ((0, 0), (0, 0), (0, wo - Wo), (0, 0)))
        args.append(r.astype(jnp.bfloat16))
        in_specs.append(pl.BlockSpec((1, th, wo, O), lambda n, t: (n, t, 0, 0)))
        kern = functools.partial(_conv3x3_res_kernel, relu=relu, th=th, wo=wo)
    else:
        kern = functools.partial(_conv3x3_kernel, relu=relu, th=th, wo=wo)

    out = pl.pallas_call(
        kern,
        out_shape=jax.ShapeDtypeStruct((N, Ho, wo, O), _ACT_DTYPE),
        grid=(N, T),
        in_specs=in_specs,
        out_specs=pl.BlockSpec((1, th, wo, O), lambda n, t: (n, t, 0, 0)),
        compiler_params=_CP2,
    )(*args)
    return out[:, :, :Wo, :] if wo != Wo else out


@jax.jit
def _add5(a, b, c, d, e):
    shape = a.shape
    C = shape[-1]
    M = a.size // C
    flat = lambda t: t.reshape(M, C).astype(_ACT_DTYPE)
    tm = M if M <= 2048 else 2048
    out = pl.pallas_call(
        _add5_kernel,
        out_shape=jax.ShapeDtypeStruct((M, C), _ACT_DTYPE),
        grid=(pl.cdiv(M, tm),),
        in_specs=[pl.BlockSpec((tm, C), lambda i: (i, 0)) for _ in range(5)],
        out_specs=pl.BlockSpec((tm, C), lambda i: (i, 0)),
        compiler_params=_CP1,
    )(flat(a), flat(b), flat(c), flat(d), flat(e))
    return out.reshape(shape)


@jax.jit
def _upsample_add_dual(up1, low3_1, low3_2):
    # up1: (N, rows, cols, C); low3_*: (N, Hl, Wl, C) with rows<=2*Hl, cols<=2*Wl
    N, rows, cols, C = up1.shape
    Hl, Wl = low3_1.shape[1], low3_1.shape[2]
    R, Cc = 2 * Hl, 2 * Wl
    if (rows, cols) != (R, Cc):
        up1 = jnp.pad(up1, ((0, 0), (0, R - rows), (0, Cc - cols), (0, 0)))
    # (N, 2Hl, 2Wl, C) viewed as (N, 2Hl, Wl, 2C): free, contiguous reinterpretation.
    u6 = up1.reshape(N, R, Wl, 2 * C)
    hb = max(1, min(Hl, 2048 // max(1, Wl)))
    T = _cdiv(Hl, hb)
    o1, o2 = pl.pallas_call(
        _up_add_dual_kernel,
        out_shape=(jax.ShapeDtypeStruct((N, R, Wl, 2 * C), _ACT_DTYPE),
                   jax.ShapeDtypeStruct((N, R, Wl, 2 * C), _ACT_DTYPE)),
        grid=(N, T),
        in_specs=[pl.BlockSpec((1, 2 * hb, Wl, 2 * C), lambda n, t: (n, t, 0, 0)),
                  pl.BlockSpec((1, hb, Wl, C), lambda n, t: (n, t, 0, 0)),
                  pl.BlockSpec((1, hb, Wl, C), lambda n, t: (n, t, 0, 0))],
        out_specs=(pl.BlockSpec((1, 2 * hb, Wl, 2 * C), lambda n, t: (n, t, 0, 0)),
                   pl.BlockSpec((1, 2 * hb, Wl, 2 * C), lambda n, t: (n, t, 0, 0))),
        compiler_params=_CP2,
    )(u6.astype(_ACT_DTYPE), low3_1.astype(_ACT_DTYPE), low3_2.astype(_ACT_DTYPE))
    o1 = o1.reshape(N, R, Cc, C)
    o2 = o2.reshape(N, R, Cc, C)
    if (rows, cols) != (R, Cc):
        o1 = o1[:, :rows, :cols, :]
        o2 = o2[:, :rows, :cols, :]
    return o1, o2


# ----------------------------------------------------------------------------
# Conv glue (BN folding, im2col for the few non-3x3 convs, deconv, pooling)
# ----------------------------------------------------------------------------
def _bn(c):
    # (gamma, beta, running_mean, running_var, eps) -- PyTorch defaults (inference).
    return (jnp.ones((c,), jnp.float32), jnp.zeros((c,), jnp.float32),
            jnp.zeros((c,), jnp.float32), jnp.ones((c,), jnp.float32), _BN_EPS)


def _fold_bn(out_ch, bias, bn):
    if bn is None:
        scale = jnp.ones((out_ch,), jnp.float32)
        shift = bias if bias is not None else jnp.zeros((out_ch,), jnp.float32)
    else:
        gamma, beta, mean, var, eps = bn
        scale = gamma / jnp.sqrt(var + eps)
        shift = beta - mean * scale
        if bias is not None:
            shift = shift + bias * scale
    return scale.astype(jnp.float32), shift.astype(jnp.float32)


def conv2d_im2col(x, w, b=None, stride=1, padding=0, bn=None, relu=False):
    """Generic conv (7x7/s2, 1x1, 2x2) via im2col + Pallas matmul. x: NHWC."""
    N, H, W, C = x.shape
    O, Cw, kh, kw = w.shape
    assert Cw == C
    xp = jnp.pad(x, ((0, 0), (padding, padding), (padding, padding), (0, 0)))
    Hp, Wp = xp.shape[1], xp.shape[2]
    Ho = (Hp - kh) // stride + 1
    Wo = (Wp - kw) // stride + 1
    cols = [xp[:, i:i + stride * Ho:stride, j:j + stride * Wo:stride, :]
            for i in range(kh) for j in range(kw)]
    patches = (cols[0] if len(cols) == 1 else jnp.concatenate(cols, axis=-1))
    patches = patches.reshape(N * Ho * Wo, kh * kw * C)
    wm = jnp.transpose(w, (2, 3, 1, 0)).reshape(kh * kw * C, O)
    scale, shift = _fold_bn(O, b, bn)
    out = _matmul_affine(patches, wm, scale, shift, relu=relu)
    return out.reshape(N, Ho, Wo, O)


def conv2d(x, w, b=None, stride=1, padding=0, bn=None, relu=False, residual=None):
    """x: NHWC; w: PyTorch Conv2d layout (O, C, kh, kw)."""
    O, C, kh, kw = w.shape
    if kh == 3 and kw == 3 and stride == 1:
        scale, shift = _fold_bn(O, b, bn)
        w9 = jnp.transpose(w, (2, 3, 1, 0)).reshape(9, C, O)
        return _conv3x3_call(x, w9, scale, shift, residual, relu=relu,
                             has_res=residual is not None, padding=padding)
    assert residual is None
    return conv2d_im2col(x, w, b=b, stride=stride, padding=padding, bn=bn, relu=relu)


def conv_transpose2d(x, w, b=None, stride=2, padding=0, output_padding=0,
                     bn=None, relu=False):
    """x: NHWC; w: PyTorch ConvTranspose2d layout (C_in, C_out, kh, kw)."""
    N, H, W, C = x.shape
    Ci, Co, kh, kw = w.shape
    assert Ci == C
    Hd = (H - 1) * stride + 1
    Wd = (W - 1) * stride + 1
    xd = jnp.zeros((N, Hd, Wd, C), x.dtype).at[:, ::stride, ::stride, :].set(x)
    ph_lo, ph_hi = kh - 1 - padding, kh - 1 - padding + output_padding
    pw_lo, pw_hi = kw - 1 - padding, kw - 1 - padding + output_padding
    xd = jnp.pad(xd, ((0, 0), (ph_lo, ph_hi), (pw_lo, pw_hi), (0, 0)))
    # equivalent forward conv: flip spatial dims, swap in/out channels
    w_eq = jnp.transpose(w[:, :, ::-1, ::-1], (1, 0, 2, 3))
    return conv2d(xd, w_eq, b=b, stride=1, padding=0, bn=bn, relu=relu)


def maxpool2x2_ceil(x):
    N, H, W, C = x.shape
    Hp, Wp = _round_up(H, 2), _round_up(W, 2)
    x = jnp.pad(x, ((0, 0), (0, Hp - H), (0, Wp - W), (0, 0)),
                constant_values=-jnp.inf)
    x = x.reshape(N, Hp // 2, 2, Wp // 2, 2, C)
    return jnp.max(x, axis=(2, 4))


# ----------------------------------------------------------------------------
# Parameter construction (deterministic, mirrors the PyTorch __init__)
# ----------------------------------------------------------------------------
class _KeyGen:
    def __init__(self, key):
        self._key = key

    def next(self):
        self._key, k = jax.random.split(self._key)
        return k


def _conv_w(kg, cout, cin, k):
    std = math.sqrt(2.0 / (k * k * cin))
    return std * jax.random.normal(kg.next(), (cout, cin, k, k), jnp.float32)


def _convT_w(kg, cin, cout, k):
    std = math.sqrt(2.0 / (k * k * cout))
    return std * jax.random.normal(kg.next(), (cin, cout, k, k), jnp.float32)


def _bias(c):
    return jnp.zeros((c,), jnp.float32)


def _make_block_params(kg, inplanes, planes, downsample):
    p = {"c1": _conv_w(kg, planes, inplanes, 3),
         "c2": _conv_w(kg, planes, planes, 3)}
    if downsample:
        p["ds_w"] = _conv_w(kg, planes, inplanes, 1)
        p["ds_b"] = _bias(planes)
    return p


def _block_fwd(p, x):
    planes = p["c1"].shape[0]
    out = conv2d(x, p["c1"], stride=1, padding=1, bn=_bn(planes), relu=True)
    if "ds_w" in p:
        residual = conv2d(x, p["ds_w"], b=p["ds_b"], stride=1, padding=0)
    else:
        residual = x
    # conv2 + bn2 + residual add + relu fused in one Pallas conv kernel
    return conv2d(out, p["c2"], stride=1, padding=1, bn=_bn(planes),
                  relu=True, residual=residual)


def _make_residual_params(kg, state, planes, blocks):
    downsample = state["inplanes"] != planes
    layers = [_make_block_params(kg, state["inplanes"], planes, downsample)]
    state["inplanes"] = planes
    for _ in range(1, blocks):
        layers.append(_make_block_params(kg, planes, planes, False))
    return layers


def _seq_fwd(layers, x):
    for p in layers:
        x = _block_fwd(p, x)
    return x


def _make_res1(kg, planes, num_blocks):
    return [_make_block_params(kg, planes, planes, False) for _ in range(num_blocks)]


def _make_hourglass_params(kg, num_blocks, planes, depth):
    hg = []
    for i in range(depth):
        res = [_make_res1(kg, planes, num_blocks) for _ in range(4)]
        if i == 0:
            res += [_make_res1(kg, planes, num_blocks),
                    _make_res1(kg, planes, num_blocks)]
        hg.append(res)
    return hg


def _hourglass_fwd(hg, n, x):
    up1 = _seq_fwd(hg[n - 1][0], x)
    low1 = maxpool2x2_ceil(x)
    low1 = _seq_fwd(hg[n - 1][1], low1)
    if n > 1:
        low2_1, low2_2 = _hourglass_fwd(hg, n - 1, low1)
    else:
        low2_1 = _seq_fwd(hg[0][4], low1)
        low2_2 = _seq_fwd(hg[0][5], low1)
    low3_1 = _seq_fwd(hg[n - 1][2], low2_1)
    low3_2 = _seq_fwd(hg[n - 1][3], low2_2)
    # fused (upsample + add) with dual outputs sharing the read of up1
    return _upsample_add_dual(up1, low3_1, low3_2)


def _fc_fwd(p, x):
    ch = p["w"].shape[0]
    return conv2d(x, p["w"], b=p["b"], bn=_bn(ch), relu=True)


def _make_decoder_params(kg, in_channels, n_filters):
    c4 = in_channels // 4
    return {
        "c1_w": _conv_w(kg, c4, in_channels, 1), "c1_b": _bias(c4),
        "d2_w": _convT_w(kg, c4, c4, 3), "d2_b": _bias(c4),
        "c3_w": _conv_w(kg, n_filters, c4, 1), "c3_b": _bias(n_filters),
    }


def _decoder_fwd(p, x):
    c4 = p["c1_w"].shape[0]
    nf = p["c3_w"].shape[0]
    x = conv2d(x, p["c1_w"], b=p["c1_b"], bn=_bn(c4), relu=True)
    x = conv_transpose2d(x, p["d2_w"], b=p["d2_b"], stride=2, padding=1,
                         output_padding=1, bn=_bn(c4), relu=True)
    x = conv2d(x, p["c3_w"], b=p["c3_b"], bn=_bn(nf), relu=True)
    return x


def init_hourglass_net(key, task1_classes=2, task2_classes=37, in_channels=3,
                       num_stacks=2, num_blocks=1, hg_num_blocks=3, depth=3):
    kg = _KeyGen(key)
    state = {"inplanes": 64}
    num_feats = 128
    P = {"num_stacks": num_stacks, "depth": depth}
    P["conv1_w"] = _conv_w(kg, 64, in_channels, 7)
    P["conv1_b"] = _bias(64)
    P["layer1"] = _make_residual_params(kg, state, 64, 1)
    P["layer2"] = _make_residual_params(kg, state, 64, num_blocks)
    P["layer3"] = _make_residual_params(kg, state, num_feats, num_blocks)
    ch = num_feats
    hg, res_1, fc_1, score_1, xfc_1, xscore_1 = [], [], [], [], [], []
    res_2, fc_2, score_2, xfc_2, xscore_2 = [], [], [], [], []
    for i in range(num_stacks):
        hg.append(_make_hourglass_params(kg, hg_num_blocks, num_feats, depth))
        res_1.append(_make_residual_params(kg, state, num_feats, hg_num_blocks))
        res_2.append(_make_residual_params(kg, state, num_feats, hg_num_blocks))
        fc_1.append({"w": _conv_w(kg, ch, ch, 1), "b": _bias(ch)})
        fc_2.append({"w": _conv_w(kg, ch, ch, 1), "b": _bias(ch)})
        score_1.append({"w": _conv_w(kg, task1_classes, ch, 1), "b": _bias(task1_classes)})
        score_2.append({"w": _conv_w(kg, task2_classes, ch, 1), "b": _bias(task2_classes)})
        if i < num_stacks - 1:
            xfc_1.append({"w": _conv_w(kg, ch, ch, 1), "b": _bias(ch)})
            xfc_2.append({"w": _conv_w(kg, ch, ch, 1), "b": _bias(ch)})
            xscore_1.append({"w": _conv_w(kg, ch, task1_classes, 1), "b": _bias(ch)})
            xscore_2.append({"w": _conv_w(kg, ch, task2_classes, 1), "b": _bias(ch)})
    P.update(hg=hg, res_1=res_1, fc_1=fc_1, score_1=score_1,
             _fc_1=xfc_1, _score_1=xscore_1,
             res_2=res_2, fc_2=fc_2, score_2=score_2,
             _fc_2=xfc_2, _score_2=xscore_2)
    inplanes = state["inplanes"]                      # == num_feats (128)
    P["decoder1"] = _make_decoder_params(kg, num_feats, inplanes)
    P["decoder1_score"] = {"w": _conv_w(kg, task1_classes, inplanes, 1),
                           "b": _bias(task1_classes)}
    P["finaldeconv1"] = {"w": _convT_w(kg, inplanes, 32, 3), "b": _bias(32)}
    P["finalconv2"] = {"w": _conv_w(kg, 32, 32, 3), "b": _bias(32)}
    P["finalconv3"] = {"w": _conv_w(kg, task1_classes, 32, 2), "b": _bias(task1_classes)}
    P["angle_decoder1"] = _make_decoder_params(kg, num_feats, inplanes)
    P["angle_decoder1_score"] = {"w": _conv_w(kg, task2_classes, inplanes, 1),
                                 "b": _bias(task2_classes)}
    P["angle_finaldeconv1"] = {"w": _convT_w(kg, inplanes, 32, 3), "b": _bias(32)}
    P["angle_finalconv2"] = {"w": _conv_w(kg, 32, 32, 3), "b": _bias(32)}
    P["angle_finalconv3"] = {"w": _conv_w(kg, task2_classes, 32, 2), "b": _bias(task2_classes)}
    return P


# ----------------------------------------------------------------------------
# HourglassNet forward
# ----------------------------------------------------------------------------
def hourglass_net_forward(P, x_nchw):
    rows, cols = x_nchw.shape[2], x_nchw.shape[3]
    x = jnp.transpose(x_nchw, (0, 2, 3, 1)).astype(_ACT_DTYPE)   # NCHW -> NHWC bf16
    out_1, out_2 = [], []

    x = conv2d(x, P["conv1_w"], b=P["conv1_b"], stride=2, padding=3,
               bn=_bn(64), relu=True)
    x = _seq_fwd(P["layer1"], x)
    x = maxpool2x2_ceil(x)
    x = _seq_fwd(P["layer2"], x)
    x = _seq_fwd(P["layer3"], x)

    r4, c4 = int(math.ceil(rows / 4.0)), int(math.ceil(cols / 4.0))
    r2, c2 = int(math.ceil(rows / 2.0)), int(math.ceil(cols / 2.0))

    y1 = y2 = None
    for i in range(P["num_stacks"]):
        y1, y2 = _hourglass_fwd(P["hg"][i], P["depth"], x)
        y1 = _seq_fwd(P["res_1"][i], y1)
        y2 = _seq_fwd(P["res_2"][i], y2)
        y1 = _fc_fwd(P["fc_1"][i], y1)
        y2 = _fc_fwd(P["fc_2"][i], y2)
        score1 = conv2d(y1, P["score_1"][i]["w"], b=P["score_1"][i]["b"])
        score2 = conv2d(y2, P["score_2"][i]["w"], b=P["score_2"][i]["b"])
        out_1.append(score1[:, :r4, :c4, :])
        out_2.append(score2[:, :r4, :c4, :])
        if i < P["num_stacks"] - 1:
            fc1_ = conv2d(y1, P["_fc_1"][i]["w"], b=P["_fc_1"][i]["b"])
            fc2_ = conv2d(y2, P["_fc_2"][i]["w"], b=P["_fc_2"][i]["b"])
            sc1_ = conv2d(score1, P["_score_1"][i]["w"], b=P["_score_1"][i]["b"])
            sc2_ = conv2d(score2, P["_score_2"][i]["w"], b=P["_score_2"][i]["b"])
            # fused 5-way add: x + fc1 + sc1 + fc2 + sc2 in a single kernel
            x = _add5(x, fc1_, sc1_, fc2_, sc2_)

    # segmentation head
    d1 = _decoder_fwd(P["decoder1"], y1)[:, :r2, :c2, :]
    d1_score = conv2d(d1, P["decoder1_score"]["w"], b=P["decoder1_score"]["b"])
    out_1.append(d1_score)
    f1 = conv_transpose2d(d1, P["finaldeconv1"]["w"], b=P["finaldeconv1"]["b"],
                          stride=2, padding=0, output_padding=0, relu=True)
    # TODO(synk): `spin` (dgcn_seg_l41/l42) source was not provided; applied as identity.
    f2 = f1
    f3 = conv2d(f2, P["finalconv2"]["w"], b=P["finalconv2"]["b"], padding=0, relu=True)
    f5 = conv2d(f3, P["finalconv3"]["w"], b=P["finalconv3"]["b"], padding=1)
    out_1.append(f5)

    # angle head
    a_d1 = _decoder_fwd(P["angle_decoder1"], y2)[:, :r2, :c2, :]
    a_d1_score = conv2d(a_d1, P["angle_decoder1_score"]["w"],
                        b=P["angle_decoder1_score"]["b"])
    out_2.append(a_d1_score)
    a_f1 = conv_transpose2d(a_d1, P["angle_finaldeconv1"]["w"],
                            b=P["angle_finaldeconv1"]["b"], stride=2,
                            padding=0, output_padding=0, relu=True)
    a_f3 = conv2d(a_f1, P["angle_finalconv2"]["w"], b=P["angle_finalconv2"]["b"],
                  padding=0, relu=True)
    a_f5 = conv2d(a_f3, P["angle_finalconv3"]["w"], b=P["angle_finalconv3"]["b"],
                  padding=1)
    out_2.append(a_f5)

    to_nchw = lambda t: jnp.transpose(t, (0, 3, 1, 2)).astype(jnp.float32)
    return [to_nchw(t) for t in out_1], [to_nchw(t) for t in out_2]


# ----------------------------------------------------------------------------
if __name__ == "__main__":
    key = jax.random.PRNGKey(0)
    pkey, xkey = jax.random.split(key)
    # Small but structurally faithful config: 2 stacks, depth-2 hourglass,
    # 1 residual block per chain, 3-channel 32x32 input, batch 2.
    params = init_hourglass_net(pkey, task1_classes=2, task2_classes=37,
                                in_channels=3, num_stacks=2, num_blocks=1,
                                hg_num_blocks=1, depth=2)
    x = jax.random.normal(xkey, (2, 3, 32, 32), jnp.float32)
    out_1, out_2 = hourglass_net_forward(params, x)
    jax.block_until_ready((out_1, out_2))
    # out_1: [(2,2,8,8), (2,2,8,8), (2,2,16,16), (2,2,32,32)]
    # out_2: [(2,37,8,8), (2,37,8,8), (2,37,16,16), (2,37,32,32)]
    print("KERNEL_OK")
</pallas_src>

<mosaic_0001>
module attributes {stable_mosaic.version = 11 : i64} {
  func.func @_mm_affine_kernel(%arg0: i32, %arg1: memref<512x147xbf16, #tpu.memory_space<vmem>>, %arg2: memref<147x64xbf16, #tpu.memory_space<vmem>>, %arg3: memref<1x64xf32, #tpu.memory_space<vmem>>, %arg4: memref<1x64xf32, #tpu.memory_space<vmem>>, %arg5: memref<512x64xbf16, #tpu.memory_space<vmem>>) attributes {dimension_semantics = [#tpu.dimension_semantics<parallel>], iteration_bounds = array<i64: 1>, scalar_prefetch = 0 : i64, scratch_operands = 0 : i64, tpu.core_type = #tpu.core_type<tc>, window_params = [{transform_indices = @transform_0, window_bounds = array<i64: 512, 147>}, {pipeline_mode = #tpu.pipeline_mode<synchronous>, transform_indices = @transform_1, window_bounds = array<i64: 147, 64>}, {pipeline_mode = #tpu.pipeline_mode<synchronous>, transform_indices = @transform_2, window_bounds = array<i64: 1, 64>}, {pipeline_mode = #tpu.pipeline_mode<synchronous>, transform_indices = @transform_3, window_bounds = array<i64: 1, 64>}, {transform_indices = @transform_4, window_bounds = array<i64: 512, 64>}]} {
    %c0 = arith.constant 0 : index
    %c0_0 = arith.constant 0 : index
    %0 = vector.load %arg1[%c0, %c0_0] : memref<512x147xbf16, #tpu.memory_space<vmem>>, vector<512x147xbf16>
    %c0_1 = arith.constant 0 : index
    %c0_2 = arith.constant 0 : index
    %1 = vector.load %arg2[%c0_1, %c0_2] : memref<147x64xbf16, #tpu.memory_space<vmem>>, vector<147x64xbf16>
    %cst = arith.constant dense<0.000000e+00> : vector<512x64xf32>
    %2 = tpu.matmul %0, %1, %cst {dimension_numbers = #tpu.dot_dimension_numbers<[1], [0], [0], [1], [0, 0, 1, 1], [], []>} : vector<512x147xbf16>, vector<147x64xbf16>, vector<512x64xf32> -> vector<512x64xf32>
    %c0_3 = arith.constant 0 : index
    %c0_4 = arith.constant 0 : index
    %3 = vector.load %arg3[%c0_3, %c0_4] : memref<1x64xf32, #tpu.memory_space<vmem>>, vector<1x64xf32>
    %4 = vector.broadcast %3 : vector<1x64xf32> to vector<512x64xf32>
    %5 = arith.mulf %2, %4 : vector<512x64xf32>
    %c0_5 = arith.constant 0 : index
    %c0_6 = arith.constant 0 : index
    %6 = vector.load %arg4[%c0_5, %c0_6] : memref<1x64xf32, #tpu.memory_space<vmem>>, vector<1x64xf32>
    %7 = vector.broadcast %6 : vector<1x64xf32> to vector<512x64xf32>
    %8 = arith.addf %5, %7 : vector<512x64xf32>
    %cst_7 = arith.constant 0.000000e+00 : f32
    %9 = vector.broadcast %cst_7 : f32 to vector<512x64xf32>
    %10 = arith.maximumf %8, %9 : vector<512x64xf32>
    %11 = arith.truncf %10 : vector<512x64xf32> to vector<512x64xbf16>
    %c0_8 = arith.constant 0 : index
    %c0_9 = arith.constant 0 : index
    %12 = vector.load %arg5[%c0_8, %c0_9] : memref<512x64xbf16, #tpu.memory_space<vmem>>, vector<512x64xbf16>
    tpu.vector_store %arg5[%c0_8, %c0_9], %11 {strides = array<i32>} : memref<512x64xbf16, #tpu.memory_space<vmem>>, vector<512x64xbf16>,
    return
  }
  func.func @transform_0(%arg0: i32) -> (i32, i32) {
    %c0_i32 = arith.constant 0 : i32
    %c0_i32_0 = arith.constant 0 : i32
    return %arg0, %c0_i32 : i32, i32
  }
  func.func @transform_1(%arg0: i32) -> (i32, i32) {
    %c0_i32 = arith.constant 0 : i32
    %c0_i32_0 = arith.constant 0 : i32
    %c0_i32_1 = arith.constant 0 : i32
    return %c0_i32, %c0_i32_0 : i32, i32
  }
  func.func @transform_2(%arg0: i32) -> (i32, i32) {
    %c0_i32 = arith.constant 0 : i32
    %c0_i32_0 = arith.constant 0 : i32
    %c0_i32_1 = arith.constant 0 : i32
    return %c0_i32, %c0_i32_0 : i32, i32
  }
  func.func @transform_3(%arg0: i32) -> (i32, i32) {
    %c0_i32 = arith.constant 0 : i32
    %c0_i32_0 = arith.constant 0 : i32
    %c0_i32_1 = arith.constant 0 : i32
    return %c0_i32, %c0_i32_0 : i32, i32
  }
  func.func @transform_4(%arg0: i32) -> (i32, i32) {
    %c0_i32 = arith.constant 0 : i32
    %c0_i32_0 = arith.constant 0 : i32
    return %arg0, %c0_i32 : i32, i32
  }
}

</mosaic_0001>

<llo_original>
// kernel: _matmul_affine.1
$region0: #{_matmul_affine.1}
  #allocation0 [shape = 'u32[]', space=smem, size = 0x4, offset = 0x4, fixed_abs, tag = 'smem constant byte address 0x4 - core index']
  #allocation1 [shape = 'u32[144,128]{1,0:T(1,128)}', space=vmem, size = 0x12000, scoped, tag = 'internal scratch']
  %s0 = inlined_call_operand.hbm [shape: bf16[512,147], index: 0, kind: input, shape index: {}]
  %s1 = inlined_call_operand.hbm [shape: bf16[147,64], index: 1, kind: input, shape index: {}]
  %s2 = inlined_call_operand.hbm [shape: f32[1,64], index: 2, kind: input, shape index: {}]
  %s3 = inlined_call_operand.hbm [shape: f32[1,64], index: 3, kind: input, shape index: {}]
  %s4 = inlined_call_operand.hbm [shape: bf16[512,64], index: 4, kind: output, shape index: {}]
  %s5 = sld [smem:[#allocation0]]
  $region42: #{_matmul_affine.1} parent=0
    _
  %s7 = ssub.s32 1, %s5
  %s8 = scalar_select 0, %s7, %s5
  $region1: #{_matmul_affine.1} parent=0
    #allocation2 [shape = 'u8[262144]{0}', space=vmem, size = 0x40000, scoped, tag = 'input window, operand 0, single buffered']
    #allocation3 [shape = 's32[1]{0}', space=sflag, size = 0x4, scoped, tag = 'scoped memory for _matmul_affine.1']
    #allocation4 [shape = 's32[1]{0}', space=sflag, size = 0x4, scoped, tag = 'scoped memory for _matmul_affine.1']
    #allocation5 [shape = 'u8[38912]{0}', space=vmem, size = 0x9800, scoped, tag = 'input window, operand 1, single buffered']
    #allocation6 [shape = 's32[1]{0}', space=sflag, size = 0x4, scoped, tag = 'scoped memory for _matmul_affine.1']
    #allocation7 [shape = 'u8[512]{0}', space=vmem, size = 0x400, scoped, tag = 'input window, operand 2, single buffered']
    #allocation8 [shape = 'u8[512]{0}', space=vmem, size = 0x400, scoped, tag = 'input window, operand 3, single buffered']
    #allocation9 [shape = 's32[1]{0}', space=sflag, size = 0x4, scoped, tag = 'scoped memory for _matmul_affine.1']
    #allocation10 [shape = 'u8[131072]{0}', space=vmem, size = 0x20000, scoped, tag = 'output window, operand 0, single buffered']
    %9 = vsyncpa [#allocation3], 0
    %10 = vsyncpa [#allocation6], 0
    %11 = vsyncpa [#allocation9], 0
    %12 = vsyncpa [#allocation4], 0
    // Predicated region
    $region2: #{_matmul_affine.1} parent=1 // pred_check
      _
    $region3: #{_matmul_affine.1} parent=1 // pred_check_branch
      %14 = sbr.rel (0) target = $region5
    $region4: #{_matmul_affine.1} parent=1 // pred_region
      %s16 = ssub.s32 8192, 8192
      %17 = vsyncadd [#allocation3], %s16
      %s18 = sshll.u32 [#allocation2], 4
      %s19 = int_to_ptr.vmem [resolvable:$true] %s18
      %24 = dma.hbm_to_vmem [thread:$0]  %s0, 8192, %s19, [#allocation3], 128, 128, 8
    $region5: #{_matmul_affine.1} parent=1 // pred_fallthru
      _
    // Predicated region
    $region6: #{_matmul_affine.1} parent=1 // pred_check
      _
    $region7: #{_matmul_affine.1} parent=1 // pred_check_branch
      %26 = sbr.rel (0) target = $region9
    $region8: #{_matmul_affine.1} parent=1 // pred_region
      %s28 = ssub.s32 1216, 1216
      %29 = vsyncadd [#allocation6], %s28
      %s30 = sshll.u32 [#allocation5], 4
      %s31 = int_to_ptr.vmem [resolvable:$true] %s30
      %36 = dma.hbm_to_vmem [thread:$0]  %s1, 1216, %s31, [#allocation6], 64, 64, 4
    $region9: #{_matmul_affine.1} parent=1 // pred_fallthru
      _
    // Predicated region
    $region10: #{_matmul_affine.1} parent=1 // pred_check
      _
    $region11: #{_matmul_affine.1} parent=1 // pred_check_branch
      %38 = sbr.rel (0) target = $region13
    $region12: #{_matmul_affine.1} parent=1 // pred_region
      %s40 = ssub.s32 16, 16
      %41 = vsyncadd [#allocation6], %s40
      %s43 = sshll.u32 [#allocation7], 4
      %s44 = int_to_ptr.vmem [resolvable:$true] %s43
      %46 = dma.hbm_to_vmem [thread:$0]  %s2, 16, %s44, [#allocation6]
    $region13: #{_matmul_affine.1} parent=1 // pred_fallthru
      _
    // Predicated region
    $region14: #{_matmul_affine.1} parent=1 // pred_check
      _
    $region15: #{_matmul_affine.1} parent=1 // pred_check_branch
      %48 = sbr.rel (0) target = $region17
    $region16: #{_matmul_affine.1} parent=1 // pred_region
      %s50 = ssub.s32 16, 16
      %51 = vsyncadd [#allocation9], %s50
      %s53 = sshll.u32 [#allocation8], 4
      %s54 = int_to_ptr.vmem [resolvable:$true] %s53
      %56 = dma.hbm_to_vmem [thread:$0]  %s3, 16, %s54, [#allocation9]
    $region17: #{_matmul_affine.1} parent=1 // pred_fallthru
      _
    // Predicated region
    $region18: #{_matmul_affine.1} parent=1 // pred_check
      _
    $region19: #{_matmul_affine.1} parent=1 // pred_check_branch
      %58 = sbr.rel (0) target = $region21
    $region20: #{_matmul_affine.1} parent=1 // pred_region
      %59 = dma.done [#allocation3], 8192
    $region21: #{_matmul_affine.1} parent=1 // pred_fallthru
      _
    // Predicated region
    $region22: #{_matmul_affine.1} parent=1 // pred_check
      _
    $region23: #{_matmul_affine.1} parent=1 // pred_check_branch
      %61 = sbr.rel (0) target = $region25
    $region24: #{_matmul_affine.1} parent=1 // pred_region
      %62 = dma.done [#allocation6], 1216
    $region25: #{_matmul_affine.1} parent=1 // pred_fallthru
      _
    // Predicated region
    $region26: #{_matmul_affine.1} parent=1 // pred_check
      _
    $region27: #{_matmul_affine.1} parent=1 // pred_check_branch
      %64 = sbr.rel (0) target = $region29
    $region28: #{_matmul_affine.1} parent=1 // pred_region
      %65 = dma.done [#allocation6], 16
    $region29: #{_matmul_affine.1} parent=1 // pred_fallthru
      _
    // Predicated region
    $region30: #{_matmul_affine.1} parent=1 // pred_check
      _
    $region31: #{_matmul_affine.1} parent=1 // pred_check_branch
      %67 = sbr.rel (0) target = $region33
    $region32: #{_matmul_affine.1} parent=1 // pred_region
      %68 = dma.done [#allocation9], 16
    $region33: #{_matmul_affine.1} parent=1 // pred_fallthru
      _
    %v70 = vld [vmem:[#allocation2] sm:$0xff]
    %v71 = vld [vmem:[#allocation2 + $0x8] sm:$0xff]
    %v72 = vld [vmem:[#allocation2 + $0x10] sm:$0xff]
    %v73 = vld [vmem:[#allocation2 + $0x18] sm:$0xff]
    %v74 = vld [vmem:[#allocation2 + $0x20] sm:$0xff]
    %v75 = vld [vmem:[#allocation2 + $0x28] sm:$0xff]
    %v76 = vld [vmem:[#allocation2 + $0x30] sm:$0xff]
    %v77 = vld [vmem:[#allocation2 + $0x38] sm:$0xff]
    %v78 = vld [vmem:[#allocation2 + $0x40] sm:$0xff]
    %v79 = vld [vmem:[#allocation2 + $0x48] sm:$0xff]
    %v80 = vld [vmem:[#allocation2 + $0x50] sm:$0xff]
    %v81 = vld [vmem:[#allocation2 + $0x58] sm:$0xff]
    %v82 = vld [vmem:[#allocation2 + $0x60] sm:$0xff]
    %v83 = vld [vmem:[#allocation2 + $0x68] sm:$0xff]
    %v84 = vld [vmem:[#allocation2 + $0x70] sm:$0xff]
    %v85 = vld [vmem:[#allocation2 + $0x78] sm:$0xff]
    %v86 = vld [vmem:[#allocation2 + $0x80] sm:$0xff]
    %v87 = vld [vmem:[#allocation2 + $0x88] sm:$0xff]
    %v88 = vld [vmem:[#allocation2 + $0x90] sm:$0xff]
    %v89 = vld [vmem:[#allocation2 + $0x98] sm:$0xff]
    %v90 = vld [vmem:[#allocation2 + $0xa0] sm:$0xff]
    %v91 = vld [vmem:[#allocation2 + $0xa8] sm:$0xff]
    %v92 = vld [vmem:[#allocation2 + $0xb0] sm:$0xff]
    %v93 = vld [vmem:[#allocation2 + $0xb8] sm:$0xff]
    %v94 = vld [vmem:[#allocation2 + $0xc0] sm:$0xff]
    %v95 = vld [vmem:[#allocation2 + $0xc8] sm:$0xff]
    %v96 = vld [vmem:[#allocation2 + $0xd0] sm:$0xff]
    %v97 = vld [vmem:[#allocation2 + $0xd8] sm:$0xff]
    %v98 = vld [vmem:[#allocation2 + $0xe0] sm:$0xff]
    %v99 = vld [vmem:[#allocation2 + $0xe8] sm:$0xff]
    %v100 = vld [vmem:[#allocation2 + $0xf0] sm:$0xff]
    %v101 = vld [vmem:[#allocation2 + $0xf8] sm:$0xff]
    %v102 = vld [vmem:[#allocation2 + $0x100] sm:$0xff]
    %v103 = vld [vmem:[#allocation2 + $0x108] sm:$0xff]
    %v104 = vld [vmem:[#allocation2 + $0x110] sm:$0xff]
    %v105 = vld [vmem:[#allocation2 + $0x118] sm:$0xff]
    %v106 = vld [vmem:[#allocation2 + $0x120] sm:$0xff]
    %v107 = vld [vmem:[#allocation2 + $0x128] sm:$0xff]
    %v108 = vld [vmem:[#allocation2 + $0x130] sm:$0xff]
    %v109 = vld [vmem:[#allocation2 + $0x138] sm:$0xff]
    %v110 = vld [vmem:[#allocation2 + $0x140] sm:$0xff]
    %v111 = vld [vmem:[#allocation2 + $0x148] sm:$0xff]
    %v112 = vld [vmem:[#allocation2 + $0x150] sm:$0xff]
    %v113 = vld [vmem:[#allocation2 + $0x158] sm:$0xff]
    %v114 = vld [vmem:[#allocation2 + $0x160] sm:$0xff]
    %v115 = vld [vmem:[#allocation2 + $0x168] sm:$0xff]
    %v116 = vld [vmem:[#allocation2 + $0x170] sm:$0xff]
    %v117 = vld [vmem:[#allocation2 + $0x178] sm:$0xff]
    %v118 = vld [vmem:[#allocation2 + $0x180] sm:$0xff]
    %v119 = vld [vmem:[#allocation2 + $0x188] sm:$0xff]
    %v120 = vld [vmem:[#allocation2 + $0x190] sm:$0xff]
    %v121 = vld [vmem:[#allocation2 + $0x198] sm:$0xff]
    %v122 = vld [vmem:[#allocation2 + $0x1a0] sm:$0xff]
    %v123 = vld [vmem:[#allocation2 + $0x1a8] sm:$0xff]
    %v124 = vld [vmem:[#allocation2 + $0x1b0] sm:$0xff]
    %v125 = vld [vmem:[#allocation2 + $0x1b8] sm:$0xff]
    %v126 = vld [vmem:[#allocation2 + $0x1c0] sm:$0xff]
    %v127 = vld [vmem:[#allocation2 + $0x1c8] sm:$0xff]
    %v128 = vld [vmem:[#allocation2 + $0x1d0] sm:$0xff]
    %v129 = vld [vmem:[#allocation2 + $0x1d8] sm:$0xff]
    %v130 = vld [vmem:[#allocation2 + $0x1e0] sm:$0xff]
    %v131 = vld [vmem:[#allocation2 + $0x1e8] sm:$0xff]
    %v132 = vld [vmem:[#allocation2 + $0x1f0] sm:$0xff]
    %v133 = vld [vmem:[#allocation2 + $0x1f8] sm:$0xff]
    %v134 = vld [vmem:[#allocation5] sm:$0xf]
    %v135 = vld [vmem:[#allocation5 + $0x4] sm:$0xf]
    %v136 = vld [vmem:[#allocation5 + $0x8] sm:$0xf]
    %v137 = vld [vmem:[#allocation5 + $0xc] sm:$0xf]
    %v138 = vld [vmem:[#allocation5 + $0x10] sm:$0xf]
    %v139 = vld [vmem:[#allocation5 + $0x14] sm:$0xf]
    %v140 = vld [vmem:[#allocation5 + $0x18] sm:$0xf]
    %v141 = vld [vmem:[#allocation5 + $0x1c] sm:$0xf]
    %v142 = vld [vmem:[#allocation5 + $0x20] sm:$0xf]
    %v143 = vld [vmem:[#allocation5 + $0x24] sm:$0xf]
    %v144 = vld [vmem:[#allocation5 + $0x28] sm:$0xf]
    %v145 = vld [vmem:[#allocation5 + $0x2c] sm:$0xf]
    %v146 = vld [vmem:[#allocation5 + $0x30] sm:$0xf]
    %v147 = vld [vmem:[#allocation5 + $0x34] sm:$0xf]
    %v148 = vld [vmem:[#allocation5 + $0x38] sm:$0xf]
    %v149 = vld [vmem:[#allocation5 + $0x3c] sm:$0xf]
    %v150 = vld [vmem:[#allocation5 + $0x40] sm:$0xf]
    %v151 = vld [vmem:[#allocation5 + $0x44] sm:$0xf]
    %v152 = vld [vmem:[#allocation5 + $0x48] sm:$0x3]
    %v217 = vunpack.c.l.b16 %v70
    %v218 = vunpack.c.h.b16 %v70
    %v219 = vunpack.c.l.b16 %v71
    %v220 = vunpack.c.h.b16 %v71
    %v221 = vunpack.c.l.b16 %v72
    %v222 = vunpack.c.h.b16 %v72
    %v223 = vunpack.c.l.b16 %v73
    %v224 = vunpack.c.h.b16 %v73
    %v225 = vunpack.c.l.b16 %v74
    %v226 = vunpack.c.h.b16 %v74
    %v227 = vunpack.c.l.b16 %v75
    %v228 = vunpack.c.h.b16 %v75
    %v229 = vunpack.c.l.b16 %v76
    %v230 = vunpack.c.h.b16 %v76
    %v231 = vunpack.c.l.b16 %v77
    %v232 = vunpack.c.h.b16 %v77
    %v233 = vunpack.c.l.b16 %v78
    %v234 = vunpack.c.h.b16 %v78
    %v235 = vunpack.c.l.b16 %v79
    %v236 = vunpack.c.h.b16 %v79
    %v237 = vunpack.c.l.b16 %v80
    %v238 = vunpack.c.h.b16 %v80
    %v239 = vunpack.c.l.b16 %v81
    %v240 = vunpack.c.h.b16 %v81
    %v241 = vunpack.c.l.b16 %v82
    %v242 = vunpack.c.h.b16 %v82
    %v243 = vunpack.c.l.b16 %v83
    %v244 = vunpack.c.h.b16 %v83
    %v245 = vunpack.c.l.b16 %v84
    %v246 = vunpack.c.h.b16 %v84
    %v247 = vunpack.c.l.b16 %v85
    %v248 = vunpack.c.h.b16 %v85
    %v249 = vunpack.c.l.b16 %v86
    %v250 = vunpack.c.h.b16 %v86
    %v251 = vunpack.c.l.b16 %v87
    %v252 = vunpack.c.h.b16 %v87
    %v253 = vunpack.c.l.b16 %v88
    %v254 = vunpack.c.h.b16 %v88
    %v255 = vunpack.c.l.b16 %v89
    %v256 = vunpack.c.h.b16 %v89
    %v257 = vunpack.c.l.b16 %v90
    %v258 = vunpack.c.h.b16 %v90
    %v259 = vunpack.c.l.b16 %v91
    %v260 = vunpack.c.h.b16 %v91
    %v261 = vunpack.c.l.b16 %v92
    %v262 = vunpack.c.h.b16 %v92
    %v263 = vunpack.c.l.b16 %v93
    %v264 = vunpack.c.h.b16 %v93
    %v265 = vunpack.c.l.b16 %v94
    %v266 = vunpack.c.h.b16 %v94
    %v267 = vunpack.c.l.b16 %v95
    %v268 = vunpack.c.h.b16 %v95
    %v269 = vunpack.c.l.b16 %v96
    %v270 = vunpack.c.h.b16 %v96
    %v271 = vunpack.c.l.b16 %v97
    %v272 = vunpack.c.h.b16 %v97
    %v273 = vunpack.c.l.b16 %v98
    %v274 = vunpack.c.h.b16 %v98
    %v275 = vunpack.c.l.b16 %v99
    %v276 = vunpack.c.h.b16 %v99
    %v277 = vunpack.c.l.b16 %v100
    %v278 = vunpack.c.h.b16 %v100
    %v279 = vunpack.c.l.b16 %v101
    %v280 = vunpack.c.h.b16 %v101
    %v281 = vunpack.c.l.b16 %v102
    %v282 = vunpack.c.h.b16 %v102
    %v283 = vunpack.c.l.b16 %v103
    %v284 = vunpack.c.h.b16 %v103
    %v285 = vunpack.c.l.b16 %v104
    %v286 = vunpack.c.h.b16 %v104
    %v287 = vunpack.c.l.b16 %v105
    %v288 = vunpack.c.h.b16 %v105
    %v289 = vunpack.c.l.b16 %v106
    %v290 = vunpack.c.h.b16 %v106
    %v291 = vunpack.c.l.b16 %v107
    %v292 = vunpack.c.h.b16 %v107
    %v293 = vunpack.c.l.b16 %v108
    %v294 = vunpack.c.h.b16 %v108
    %v295 = vunpack.c.l.b16 %v109
    %v296 = vunpack.c.h.b16 %v109
    %v297 = vunpack.c.l.b16 %v110
    %v298 = vunpack.c.h.b16 %v110
    %v299 = vunpack.c.l.b16 %v111
    %v300 = vunpack.c.h.b16 %v111
    %v301 = vunpack.c.l.b16 %v112
    %v302 = vunpack.c.h.b16 %v112
    %v303 = vunpack.c.l.b16 %v113
    %v304 = vunpack.c.h.b16 %v113
    %v305 = vunpack.c.l.b16 %v114
    %v306 = vunpack.c.h.b16 %v114
    %v307 = vunpack.c.l.b16 %v115
    %v308 = vunpack.c.h.b16 %v115
    %v309 = vunpack.c.l.b16 %v116
    %v310 = vunpack.c.h.b16 %v116
    %v311 = vunpack.c.l.b16 %v117
    %v312 = vunpack.c.h.b16 %v117
    %v313 = vunpack.c.l.b16 %v118
    %v314 = vunpack.c.h.b16 %v118
    %v315 = vunpack.c.l.b16 %v119
    %v316 = vunpack.c.h.b16 %v119
    %v317 = vunpack.c.l.b16 %v120
    %v318 = vunpack.c.h.b16 %v120
    %v319 = vunpack.c.l.b16 %v121
    %v320 = vunpack.c.h.b16 %v121
    %v321 = vunpack.c.l.b16 %v122
    %v322 = vunpack.c.h.b16 %v122
    %v323 = vunpack.c.l.b16 %v123
    %v324 = vunpack.c.h.b16 %v123
    %v325 = vunpack.c.l.b16 %v124
    %v326 = vunpack.c.h.b16 %v124
    %v327 = vunpack.c.l.b16 %v125
    %v328 = vunpack.c.h.b16 %v125
    %v329 = vunpack.c.l.b16 %v126
    %v330 = vunpack.c.h.b16 %v126
    %v331 = vunpack.c.l.b16 %v127
    %v332 = vunpack.c.h.b16 %v127
    %v333 = vunpack.c.l.b16 %v128
    %v334 = vunpack.c.h.b16 %v128
    %v335 = vunpack.c.l.b16 %v129
    %v336 = vunpack.c.h.b16 %v129
    %v337 = vunpack.c.l.b16 %v130
    %v338 = vunpack.c.h.b16 %v130
    %v339 = vunpack.c.l.b16 %v131
    %v340 = vunpack.c.h.b16 %v131
    %v341 = vunpack.c.l.b16 %v132
    %v342 = vunpack.c.h.b16 %v132
    %v343 = vunpack.c.l.b16 %v133
    %v344 = vunpack.c.h.b16 %v133
    %v345 = vpack.c.b16 %v219, %v217
    %v346 = vpack.c.b16 %v220, %v218
    %v347 = vpack.c.b16 %v223, %v221
    %v348 = vpack.c.b16 %v224, %v222
    %v349 = vpack.c.b16 %v227, %v225
    %v350 = vpack.c.b16 %v228, %v226
    %v351 = vpack.c.b16 %v231, %v229
    %v352 = vpack.c.b16 %v232, %v230
    %v353 = vpack.c.b16 %v235, %v233
    %v354 = vpack.c.b16 %v236, %v234
    %v355 = vpack.c.b16 %v239, %v237
    %v356 = vpack.c.b16 %v240, %v238
    %v357 = vpack.c.b16 %v243, %v241
    %v358 = vpack.c.b16 %v244, %v242
    %v359 = vpack.c.b16 %v247, %v245
    %v360 = vpack.c.b16 %v248, %v246
    %v361 = vpack.c.b16 %v251, %v249
    %v362 = vpack.c.b16 %v252, %v250
    %v363 = vpack.c.b16 %v255, %v253
    %v364 = vpack.c.b16 %v256, %v254
    %v365 = vpack.c.b16 %v259, %v257
    %v366 = vpack.c.b16 %v260, %v258
    %v367 = vpack.c.b16 %v263, %v261
    %v368 = vpack.c.b16 %v264, %v262
    %v369 = vpack.c.b16 %v267, %v265
    %v370 = vpack.c.b16 %v268, %v266
    %v371 = vpack.c.b16 %v271, %v269
    %v372 = vpack.c.b16 %v272, %v270
    %v373 = vpack.c.b16 %v275, %v273
    %v374 = vpack.c.b16 %v276, %v274
    %v375 = vpack.c.b16 %v279, %v277
    %v376 = vpack.c.b16 %v280, %v278
    %v377 = vpack.c.b16 %v283, %v281
    %v378 = vpack.c.b16 %v284, %v282
    %v379 = vpack.c.b16 %v287, %v285
    %v380 = vpack.c.b16 %v288, %v286
    %v381 = vpack.c.b16 %v291, %v289
    %v382 = vpack.c.b16 %v292, %v290
    %v383 = vpack.c.b16 %v295, %v293
    %v384 = vpack.c.b16 %v296, %v294
    %v385 = vpack.c.b16 %v299, %v297
    %v386 = vpack.c.b16 %v300, %v298
    %v387 = vpack.c.b16 %v303, %v301
    %v388 = vpack.c.b16 %v304, %v302
    %v389 = vpack.c.b16 %v307, %v305
    %v390 = vpack.c.b16 %v308, %v306
    %v391 = vpack.c.b16 %v311, %v309
    %v392 = vpack.c.b16 %v312, %v310
    %v393 = vpack.c.b16 %v315, %v313
    %v394 = vpack.c.b16 %v316, %v314
    %v395 = vpack.c.b16 %v319, %v317
    %v396 = vpack.c.b16 %v320, %v318
    %v397 = vpack.c.b16 %v323, %v321
    %v398 = vpack.c.b16 %v324, %v322
    %v399 = vpack.c.b16 %v327, %v325
    %v400 = vpack.c.b16 %v328, %v326
    %v401 = vpack.c.b16 %v331, %v329
    %v402 = vpack.c.b16 %v332, %v330
    %v403 = vpack.c.b16 %v335, %v333
    %v404 = vpack.c.b16 %v336, %v334
    %v405 = vpack.c.b16 %v339, %v337
    %v406 = vpack.c.b16 %v340, %v338
    %v407 = vpack.c.b16 %v343, %v341
    %v408 = vpack.c.b16 %v344, %v342
    %v460 = vunpack.c.l.b16 %v134
    %v461 = vunpack.c.l.b16 %v135
    %v462 = vunpack.c.l.b16 %v136
    %v463 = vunpack.c.l.b16 %v137
    %v464 = vunpack.c.l.b16 %v138
    %v465 = vunpack.c.l.b16 %v139
    %v466 = vunpack.c.l.b16 %v140
    %v467 = vunpack.c.l.b16 %v141
    %v468 = vunpack.c.l.b16 %v142
    %v469 = vunpack.c.l.b16 %v143
    %v470 = vunpack.c.l.b16 %v144
    %v471 = vunpack.c.l.b16 %v145
    %v472 = vunpack.c.l.b16 %v146
    %v473 = vunpack.c.l.b16 %v147
    %v474 = vunpack.c.l.b16 %v148
    %v475 = vunpack.c.l.b16 %v149
    %v476 = vunpack.c.l.b16 %v150
    %v477 = vunpack.c.l.b16 %v151
    %v478 = vunpack.c.l.b16 %v152
    %v479 = vpack.c.b16 %v461, %v460
    %v480 = vpack.c.b16 %v463, %v462
    %v481 = vpack.c.b16 %v465, %v464
    %v482 = vpack.c.b16 %v467, %v466
    %v483 = vpack.c.b16 %v469, %v468
    %v484 = vpack.c.b16 %v471, %v470
    %v485 = vpack.c.b16 %v473, %v472
    %v486 = vpack.c.b16 %v475, %v474
    %v487 = vpack.c.b16 %v477, %v476
    %v488 = vpack.c.b16 %v478, %v478
    %vm498 = vcmask 154624
    %v500 = vsel %vm498, %v346, 0
    %v503 = vsel %vm498, %v348, 0
    %v506 = vsel %vm498, %v350, 0
    %v509 = vsel %vm498, %v352, 0
    %v512 = vsel %vm498, %v354, 0
    %v515 = vsel %vm498, %v356, 0
    %v518 = vsel %vm498, %v358, 0
    %v521 = vsel %vm498, %v360, 0
    %v524 = vsel %vm498, %v362, 0
    %v527 = vsel %vm498, %v364, 0
    %v530 = vsel %vm498, %v366, 0
    %v533 = vsel %vm498, %v368, 0
    %v536 = vsel %vm498, %v370, 0
    %v539 = vsel %vm498, %v372, 0
    %v542 = vsel %vm498, %v374, 0
    %v545 = vsel %vm498, %v376, 0
    %v548 = vsel %vm498, %v378, 0
    %v551 = vsel %vm498, %v380, 0
    %v554 = vsel %vm498, %v382, 0
    %v557 = vsel %vm498, %v384, 0
    %v560 = vsel %vm498, %v386, 0
    %v563 = vsel %vm498, %v388, 0
    %v566 = vsel %vm498, %v390, 0
    %v569 = vsel %vm498, %v392, 0
    %v572 = vsel %vm498, %v394, 0
    %v575 = vsel %vm498, %v396, 0
    %v578 = vsel %vm498, %v398, 0
    %v581 = vsel %vm498, %v400, 0
    %v584 = vsel %vm498, %v402, 0
    %v587 = vsel %vm498, %v404, 0
    %v590 = vsel %vm498, %v406, 0
    %v593 = vsel %vm498, %v408, 0
    %vm595 = vcmask 1040384
    %vm596 = vcmask 1041408
    %v597 = vsel %vm595, 4294967295, 65535
    %v598 = vsel %vm596, %v597, 0
    %v600 = vand.u32 %v488, %v598
    %602 = vmatprep.subr.bf16.mxu0 0
    %603 = vmatpush1.bf16.msra.mxu0 %v479
    %604 = vmatprep.subr.bf16.mxu0 0
    %605 = vmatpush1.bf16.msra.mxu0 %v480
    %606 = vmatprep.subr.bf16.mxu0 0
    %607 = vmatpush1.bf16.msra.mxu0 %v481
    %608 = vmatprep.subr.bf16.mxu0 0
    %609 = vmatpush1.bf16.msra.mxu0 %v482
    %610 = vmatprep.subr.bf16.mxu0 0
    %611 = vmatpush1.bf16.msra.mxu0 %v483
    %612 = vmatprep.subr.bf16.mxu0 0
    %613 = vmatpush1.bf16.msra.mxu0 %v484
    %614 = vmatprep.subr.bf16.mxu0 0
    %615 = vmatpush1.bf16.msra.mxu0 %v485
    %616 = vmatprep.subr.bf16.mxu0 0
    %617 = vmatpush1.bf16.msra.mxu0 %v486
    %618 = vmatprep.subr.bf16.mxu0 0
    %619 = vmatpush1.bf16.msra.mxu0 %v487
    %620 = vmatprep.subr.bf16.mxu0 0
    %621 = vmatpush1.bf16.msra.mxu0 %v600
    %622 = vmatprep.subr.bf16.mxu0 0
    %623 = vmatpush1.bf16.msra.mxu0 0
    %624 = vmatprep.subr.bf16.mxu0 0
    %625 = vmatpush1.bf16.msra.mxu0 0
    %626 = vmatprep.subr.bf16.mxu0 0
    %627 = vmatpush1.bf16.msra.mxu0 0
    %628 = vmatprep.subr.bf16.mxu0 0
    %629 = vmatpush1.bf16.msra.mxu0 0
    %630 = vmatprep.subr.bf16.mxu0 0
    %631 = vmatpush1.bf16.msra.mxu0 0
    %632 = vmatprep.subr.bf16.mxu0 0
    %633 = vmatpush1.bf16.msra.mxu0 0
    %634 = vmatprep.mubr.bf16.mxu0 %v500
    %635 = vmatmul.mubr.bf16.gmra.mrb[0].mxu0 %v345
    %v636 = vpop.f32.mrb[0].mxu0
    %v637 = vadd.f32 0.0, %v636
    %v638 = vpop.f32.mrb[0].mxu0
    %v639 = vpop.f32.mrb[0].mxu0
    %v640 = vadd.f32 0.0, %v639
    %v641 = vpop.f32.mrb[0].mxu0
    %642 = vmatprep.mubr.bf16.mxu0 %v503
    %643 = vmatmul.mubr.bf16.gmra.mrb[0].mxu0 %v347
    %v644 = vpop.f32.mrb[0].mxu0
    %v645 = vadd.f32 0.0, %v644
    %v646 = vpop.f32.mrb[0].mxu0
    %v647 = vpop.f32.mrb[0].mxu0
    %v648 = vadd.f32 0.0, %v647
    %v649 = vpop.f32.mrb[0].mxu0
    %650 = vmatprep.mubr.bf16.mxu0 %v506
    %651 = vmatmul.mubr.bf16.gmra.mrb[0].mxu0 %v349
    %v652 = vpop.f32.mrb[0].mxu0
    %v653 = vadd.f32 0.0, %v652
    %v654 = vpop.f32.mrb[0].mxu0
    %v655 = vpop.f32.mrb[0].mxu0
    %v656 = vadd.f32 0.0, %v655
    %v657 = vpop.f32.mrb[0].mxu0
    %658 = vmatprep.mubr.bf16.mxu0 %v509
    %659 = vmatmul.mubr.bf16.gmra.mrb[0].mxu0 %v351
    %v660 = vpop.f32.mrb[0].mxu0
    %v661 = vadd.f32 0.0, %v660
    %v662 = vpop.f32.mrb[0].mxu0
    %v663 = vpop.f32.mrb[0].mxu0
    %v664 = vadd.f32 0.0, %v663
    %v665 = vpop.f32.mrb[0].mxu0
    %666 = vmatprep.mubr.bf16.mxu0 %v512
    %667 = vmatmul.mubr.bf16.gmra.mrb[0].mxu0 %v353
    %v668 = vpop.f32.mrb[0].mxu0
    %v669 = vadd.f32 0.0, %v668
    %v670 = vpop.f32.mrb[0].mxu0
    %v671 = vpop.f32.mrb[0].mxu0
    %v672 = vadd.f32 0.0, %v671
    %v673 = vpop.f32.mrb[0].mxu0
    %674 = vmatprep.mubr.bf16.mxu0 %v515
    %675 = vmatmul.mubr.bf16.gmra.mrb[0].mxu0 %v355
    %v676 = vpop.f32.mrb[0].mxu0
    %v677 = vadd.f32 0.0, %v676
    %v678 = vpop.f32.mrb[0].mxu0
    %v679 = vpop.f32.mrb[0].mxu0
    %v680 = vadd.f32 0.0, %v679
    %v681 = vpop.f32.mrb[0].mxu0
    %682 = vmatprep.mubr.bf16.mxu0 %v518
    %683 = vmatmul.mubr.bf16.gmra.mrb[0].mxu0 %v357
    %v684 = vpop.f32.mrb[0].mxu0
    %v685 = vadd.f32 0.0, %v684
    %v686 = vpop.f32.mrb[0].mxu0
    %v687 = vpop.f32.mrb[0].mxu0
    %v688 = vadd.f32 0.0, %v687
    %v689 = vpop.f32.mrb[0].mxu0
    %690 = vmatprep.mubr.bf16.mxu0 %v521
    %691 = vmatmul.mubr.bf16.gmra.mrb[0].mxu0 %v359
    %v692 = vpop.f32.mrb[0].mxu0
    %v693 = vadd.f32 0.0, %v692
    %v694 = vpop.f32.mrb[0].mxu0
    %v695 = vpop.f32.mrb[0].mxu0
    %v696 = vadd.f32 0.0, %v695
    %v697 = vpop.f32.mrb[0].mxu0
    %698 = vmatprep.mubr.bf16.mxu0 %v524
    %699 = vmatmul.mubr.bf16.gmra.mrb[0].mxu0 %v361
    %v700 = vpop.f32.mrb[0].mxu0
    %v701 = vadd.f32 0.0, %v700
    %v702 = vpop.f32.mrb[0].mxu0
    %v703 = vpop.f32.mrb[0].mxu0
    %v704 = vadd.f32 0.0, %v703
    %v705 = vpop.f32.mrb[0].mxu0
    %706 = vmatprep.mubr.bf16.mxu0 %v527
    %707 = vmatmul.mubr.bf16.gmra.mrb[0].mxu0 %v363
    %v708 = vpop.f32.mrb[0].mxu0
    %v709 = vadd.f32 0.0, %v708
    %v710 = vpop.f32.mrb[0].mxu0
    %v711 = vpop.f32.mrb[0].mxu0
    %v712 = vadd.f32 0.0, %v711
    %v713 = vpop.f32.mrb[0].mxu0
    %714 = vmatprep.mubr.bf16.mxu0 %v530
    %715 = vmatmul.mubr.bf16.gmra.mrb[0].mxu0 %v365
    %v716 = vpop.f32.mrb[0].mxu0
    %v717 = vadd.f32 0.0, %v716
    %v718 = vpop.f32.mrb[0].mxu0
    %v719 = vpop.f32.mrb[0].mxu0
    %v720 = vadd.f32 0.0, %v719
    %v721 = vpop.f32.mrb[0].mxu0
    %722 = vmatprep.mubr.bf16.mxu0 %v533
    %723 = vmatmul.mubr.bf16.gmra.mrb[0].mxu0 %v367
    %v724 = vpop.f32.mrb[0].mxu0
    %v725 = vadd.f32 0.0, %v724
    %v726 = vpop.f32.mrb[0].mxu0
    %v727 = vpop.f32.mrb[0].mxu0
    %v728 = vadd.f32 0.0, %v727
    %v729 = vpop.f32.mrb[0].mxu0
    %730 = vmatprep.mubr.bf16.mxu0 %v536
    %731 = vmatmul.mubr.bf16.gmra.mrb[0].mxu0 %v369
    %v732 = vpop.f32.mrb[0].mxu0
    %v733 = vadd.f32 0.0, %v732
    %v734 = vpop.f32.mrb[0].mxu0
    %v735 = vpop.f32.mrb[0].mxu0
    %v736 = vadd.f32 0.0, %v735
    %v737 = vpop.f32.mrb[0].mxu0
    %738 = vmatprep.mubr.bf16.mxu0 %v539
    %739 = vmatmul.mubr.bf16.gmra.mrb[0].mxu0 %v371
    %v740 = vpop.f32.mrb[0].mxu0
    %v741 = vadd.f32 0.0, %v740
    %v742 = vpop.f32.mrb[0].mxu0
    %v743 = vpop.f32.mrb[0].mxu0
    %v744 = vadd.f32 0.0, %v743
    %v745 = vpop.f32.mrb[0].mxu0
    %746 = vmatprep.mubr.bf16.mxu0 %v542
    %747 = vmatmul.mubr.bf16.gmra.mrb[0].mxu0 %v373
    %v748 = vpop.f32.mrb[0].mxu0
    %v749 = vadd.f32 0.0, %v748
    %v750 = vpop.f32.mrb[0].mxu0
    %v751 = vpop.f32.mrb[0].mxu0
    %v752 = vadd.f32 0.0, %v751
    %v753 = vpop.f32.mrb[0].mxu0
    %754 = vmatprep.mubr.bf16.mxu0 %v545
    %755 = vmatmul.mubr.bf16.gmra.mrb[0].mxu0 %v375
    %v756 = vpop.f32.mrb[0].mxu0
    %v757 = vadd.f32 0.0, %v756
    %v758 = vpop.f32.mrb[0].mxu0
    %v759 = vpop.f32.mrb[0].mxu0
    %v760 = vadd.f32 0.0, %v759
    %v761 = vpop.f32.mrb[0].mxu0
    %762 = vmatprep.mubr.bf16.mxu0 %v548
    %763 = vmatmul.mubr.bf16.gmra.mrb[0].mxu0 %v377
    %v764 = vpop.f32.mrb[0].mxu0
    %v765 = vadd.f32 0.0, %v764
    %v766 = vpop.f32.mrb[0].mxu0
    %v767 = vpop.f32.mrb[0].mxu0
    %v768 = vadd.f32 0.0, %v767
    %v769 = vpop.f32.mrb[0].mxu0
    %770 = vmatprep.mubr.bf16.mxu0 %v551
    %771 = vmatmul.mubr.bf16.gmra.mrb[0].mxu0 %v379
    %v772 = vpop.f32.mrb[0].mxu0
    %v773 = vadd.f32 0.0, %v772
    %v774 = vpop.f32.mrb[0].mxu0
    %v775 = vpop.f32.mrb[0].mxu0
    %v776 = vadd.f32 0.0, %v775
    %v777 = vpop.f32.mrb[0].mxu0
    %778 = vmatprep.mubr.bf16.mxu0 %v554
    %779 = vmatmul.mubr.bf16.gmra.mrb[0].mxu0 %v381
    %v780 = vpop.f32.mrb[0].mxu0
    %v781 = vadd.f32 0.0, %v780
    %v782 = vpop.f32.mrb[0].mxu0
    %v783 = vpop.f32.mrb[0].mxu0
    %v784 = vadd.f32 0.0, %v783
    %v785 = vpop.f32.mrb[0].mxu0
    %786 = vmatprep.mubr.bf16.mxu0 %v557
    %787 = vmatmul.mubr.bf16.gmra.mrb[0].mxu0 %v383
    %v788 = vpop.f32.mrb[0].mxu0
    %v789 = vadd.f32 0.0, %v788
    %v790 = vpop.f32.mrb[0].mxu0
    %v791 = vpop.f32.mrb[0].mxu0
    %v792 = vadd.f32 0.0, %v791
    %v793 = vpop.f32.mrb[0].mxu0
    %794 = vmatprep.mubr.bf16.mxu0 %v560
    %795 = vmatmul.mubr.bf16.gmra.mrb[0].mxu0 %v385
    %v796 = vpop.f32.mrb[0].mxu0
    %v797 = vadd.f32 0.0, %v796
    %v798 = vpop.f32.mrb[0].mxu0
    %v799 = vpop.f32.mrb[0].mxu0
    %v800 = vadd.f32 0.0, %v799
    %v801 = vpop.f32.mrb[0].mxu0
    %802 = vmatprep.mubr.bf16.mxu0 %v563
    %803 = vmatmul.mubr.bf16.gmra.mrb[0].mxu0 %v387
    %v804 = vpop.f32.mrb[0].mxu0
    %v805 = vadd.f32 0.0, %v804
    %v806 = vpop.f32.mrb[0].mxu0
    %v807 = vpop.f32.mrb[0].mxu0
    %v808 = vadd.f32 0.0, %v807
    %v809 = vpop.f32.mrb[0].mxu0
    %810 = vmatprep.mubr.bf16.mxu0 %v566
    %811 = vmatmul.mubr.bf16.gmra.mrb[0].mxu0 %v389
    %v812 = vpop.f32.mrb[0].mxu0
    %v813 = vadd.f32 0.0, %v812
    %v814 = vpop.f32.mrb[0].mxu0
    %v815 = vpop.f32.mrb[0].mxu0
    %v816 = vadd.f32 0.0, %v815
    %v817 = vpop.f32.mrb[0].mxu0
    %818 = vmatprep.mubr.bf16.mxu0 %v569
    %819 = vmatmul.mubr.bf16.gmra.mrb[0].mxu0 %v391
    %v820 = vpop.f32.mrb[0].mxu0
    %v821 = vadd.f32 0.0, %v820
    %v822 = vpop.f32.mrb[0].mxu0
    %v823 = vpop.f32.mrb[0].mxu0
    %v824 = vadd.f32 0.0, %v823
    %v825 = vpop.f32.mrb[0].mxu0
    %826 = vmatprep.mubr.bf16.mxu0 %v572
    %827 = vmatmul.mubr.bf16.gmra.mrb[0].mxu0 %v393
    %v828 = vpop.f32.mrb[0].mxu0
    %v829 = vadd.f32 0.0, %v828
    %v830 = vpop.f32.mrb[0].mxu0
    %v831 = vpop.f32.mrb[0].mxu0
    %v832 = vadd.f32 0.0, %v831
    %v833 = vpop.f32.mrb[0].mxu0
    %834 = vmatprep.mubr.bf16.mxu0 %v575
    %835 = vmatmul.mubr.bf16.gmra.mrb[0].mxu0 %v395
    %v836 = vpop.f32.mrb[0].mxu0
    %v837 = vadd.f32 0.0, %v836
    %v838 = vpop.f32.mrb[0].mxu0
    %v839 = vpop.f32.mrb[0].mxu0
    %v840 = vadd.f32 0.0, %v839
    %v841 = vpop.f32.mrb[0].mxu0
    %842 = vmatprep.mubr.bf16.mxu0 %v578
    %843 = vmatmul.mubr.bf16.gmra.mrb[0].mxu0 %v397
    %v844 = vpop.f32.mrb[0].mxu0
    %v845 = vadd.f32 0.0, %v844
    %v846 = vpop.f32.mrb[0].mxu0
    %v847 = vpop.f32.mrb[0].mxu0
    %v848 = vadd.f32 0.0, %v847
    %v849 = vpop.f32.mrb[0].mxu0
    %850 = vmatprep.mubr.bf16.mxu0 %v581
    %851 = vmatmul.mubr.bf16.gmra.mrb[0].mxu0 %v399
    %v852 = vpop.f32.mrb[0].mxu0
    %v853 = vadd.f32 0.0, %v852
    %v854 = vpop.f32.mrb[0].mxu0
    %v855 = vpop.f32.mrb[0].mxu0
    %v856 = vadd.f32 0.0, %v855
    %v857 = vpop.f32.mrb[0].mxu0
    %858 = vmatprep.mubr.bf16.mxu0 %v584
    %859 = vmatmul.mubr.bf16.gmra.mrb[0].mxu0 %v401
    %v860 = vpop.f32.mrb[0].mxu0
    %v861 = vadd.f32 0.0, %v860
    %v862 = vpop.f32.mrb[0].mxu0
    %v863 = vpop.f32.mrb[0].mxu0
    %v864 = vadd.f32 0.0, %v863
    %v865 = vpop.f32.mrb[0].mxu0
    %866 = vmatprep.mubr.bf16.mxu0 %v587
    %867 = vmatmul.mubr.bf16.gmra.mrb[0].mxu0 %v403
    %v868 = vpop.f32.mrb[0].mxu0
    %v869 = vadd.f32 0.0, %v868
    %v870 = vpop.f32.mrb[0].mxu0
    %v871 = vpop.f32.mrb[0].mxu0
    %v872 = vadd.f32 0.0, %v871
    %v873 = vpop.f32.mrb[0].mxu0
    %874 = vmatprep.mubr.bf16.mxu0 %v590
    %875 = vmatmul.mubr.bf16.gmra.mrb[0].mxu0 %v405
    %v876 = vpop.f32.mrb[0].mxu0
    %v877 = vadd.f32 0.0, %v876
    %v878 = vpop.f32.mrb[0].mxu0
    %v879 = vpop.f32.mrb[0].mxu0
    %v880 = vadd.f32 0.0, %v879
    %v881 = vpop.f32.mrb[0].mxu0
    %882 = vmatprep.mubr.bf16.mxu0 %v593
    %883 = vmatmul.mubr.bf16.gmra.mrb[0].mxu0 %v407
    %v884 = vpop.f32.mrb[0].mxu0
    %v885 = vadd.f32 0.0, %v884
    %v886 = vpop.f32.mrb[0].mxu0
    %v887 = vpop.f32.mrb[0].mxu0
    %v888 = vadd.f32 0.0, %v887
    %v889 = vpop.f32.mrb[0].mxu0
    %890 = vdwg.mxu0
    %v891 = vld [vmem:[#allocation7] sm:$0x1]
    %v893 = vlaneseq
    %v894 = vshrl.u32 %v893, 7
    %v895 = vsub.s32 0, %v894
    %v896 = vrot.slane %v891, %v895
    %v898 = vmul.f32 %v637, %v896
    %v899 = vmul.f32 %v640, %v896
    %v900 = vmul.f32 %v645, %v896
    %v901 = vmul.f32 %v648, %v896
    %v902 = vmul.f32 %v653, %v896
    %v903 = vmul.f32 %v656, %v896
    %v904 = vmul.f32 %v661, %v896
    %v905 = vmul.f32 %v664, %v896
    %v906 = vmul.f32 %v669, %v896
    %v907 = vmul.f32 %v672, %v896
    %v908 = vmul.f32 %v677, %v896
    %v909 = vmul.f32 %v680, %v896
    %v910 = vmul.f32 %v685, %v896
    %v911 = vmul.f32 %v688, %v896
    %v912 = vmul.f32 %v693, %v896
    %v913 = vmul.f32 %v696, %v896
    %v914 = vmul.f32 %v701, %v896
    %v915 = vmul.f32 %v704, %v896
    %v916 = vmul.f32 %v709, %v896
    %v917 = vmul.f32 %v712, %v896
    %v918 = vmul.f32 %v717, %v896
    %v919 = vmul.f32 %v720, %v896
    %v920 = vmul.f32 %v725, %v896
    %v921 = vmul.f32 %v728, %v896
    %v922 = vmul.f32 %v733, %v896
    %v923 = vmul.f32 %v736, %v896
    %v924 = vmul.f32 %v741, %v896
    %v925 = vmul.f32 %v744, %v896
    %v926 = vmul.f32 %v749, %v896
    %v927 = vmul.f32 %v752, %v896
    %v928 = vmul.f32 %v757, %v896
    %v929 = vmul.f32 %v760, %v896
    %v930 = vmul.f32 %v765, %v896
    %v931 = vmul.f32 %v768, %v896
    %v932 = vmul.f32 %v773, %v896
    %v933 = vmul.f32 %v776, %v896
    %v934 = vmul.f32 %v781, %v896
    %v935 = vmul.f32 %v784, %v896
    %v936 = vmul.f32 %v789, %v896
    %v937 = vmul.f32 %v792, %v896
    %v938 = vmul.f32 %v797, %v896
    %v939 = vmul.f32 %v800, %v896
    %v940 = vmul.f32 %v805, %v896
    %v941 = vmul.f32 %v808, %v896
    %v942 = vmul.f32 %v813, %v896
    %v943 = vmul.f32 %v816, %v896
    %v944 = vmul.f32 %v821, %v896
    %v945 = vmul.f32 %v824, %v896
    %v946 = vmul.f32 %v829, %v896
    %v947 = vmul.f32 %v832, %v896
    %v948 = vmul.f32 %v837, %v896
    %v949 = vmul.f32 %v840, %v896
    %v950 = vmul.f32 %v845, %v896
    %v951 = vmul.f32 %v848, %v896
    %v952 = vmul.f32 %v853, %v896
    %v953 = vmul.f32 %v856, %v896
    %v954 = vmul.f32 %v861, %v896
    %v955 = vmul.f32 %v864, %v896
    %v956 = vmul.f32 %v869, %v896
    %v957 = vmul.f32 %v872, %v896
    %v958 = vmul.f32 %v877, %v896
    %v959 = vmul.f32 %v880, %v896
    %v960 = vmul.f32 %v885, %v896
    %v961 = vmul.f32 %v888, %v896
    %v962 = vld [vmem:[#allocation8] sm:$0x1]
    %v964 = vlaneseq
    %v965 = vshrl.u32 %v964, 7
    %v966 = vsub.s32 0, %v965
    %v967 = vrot.slane %v962, %v966
    %v969 = vadd.f32 %v898, %v967
    %v970 = vadd.f32 %v899, %v967
    %v971 = vadd.f32 %v900, %v967
    %v972 = vadd.f32 %v901, %v967
    %v973 = vadd.f32 %v902, %v967
    %v974 = vadd.f32 %v903, %v967
    %v975 = vadd.f32 %v904, %v967
    %v976 = vadd.f32 %v905, %v967
    %v977 = vadd.f32 %v906, %v967
    %v978 = vadd.f32 %v907, %v967
    %v979 = vadd.f32 %v908, %v967
    %v980 = vadd.f32 %v909, %v967
    %v981 = vadd.f32 %v910, %v967
    %v982 = vadd.f32 %v911, %v967
    %v983 = vadd.f32 %v912, %v967
    %v984 = vadd.f32 %v913, %v967
    %v985 = vadd.f32 %v914, %v967
    %v986 = vadd.f32 %v915, %v967
    %v987 = vadd.f32 %v916, %v967
    %v988 = vadd.f32 %v917, %v967
    %v989 = vadd.f32 %v918, %v967
    %v990 = vadd.f32 %v919, %v967
    %v991 = vadd.f32 %v920, %v967
    %v992 = vadd.f32 %v921, %v967
    %v993 = vadd.f32 %v922, %v967
    %v994 = vadd.f32 %v923, %v967
    %v995 = vadd.f32 %v924, %v967
    %v996 = vadd.f32 %v925, %v967
    %v997 = vadd.f32 %v926, %v967
    %v998 = vadd.f32 %v927, %v967
    %v999 = vadd.f32 %v928, %v967
    %v1000 = vadd.f32 %v929, %v967
    %v1001 = vadd.f32 %v930, %v967
    %v1002 = vadd.f32 %v931, %v967
    %v1003 = vadd.f32 %v932, %v967
    %v1004 = vadd.f32 %v933, %v967
    %v1005 = vadd.f32 %v934, %v967
    %v1006 = vadd.f32 %v935, %v967
    %v1007 = vadd.f32 %v936, %v967
    %v1008 = vadd.f32 %v937, %v967
    %v1009 = vadd.f32 %v938, %v967
    %v1010 = vadd.f32 %v939, %v967
    %v1011 = vadd.f32 %v940, %v967
    %v1012 = vadd.f32 %v941, %v967
    %v1013 = vadd.f32 %v942, %v967
    %v1014 = vadd.f32 %v943, %v967
    %v1015 = vadd.f32 %v944, %v967
    %v1016 = vadd.f32 %v945, %v967
    %v1017 = vadd.f32 %v946, %v967
    %v1018 = vadd.f32 %v947, %v967
    %v1019 = vadd.f32 %v948, %v967
    %v1020 = vadd.f32 %v949, %v967
    %v1021 = vadd.f32 %v950, %v967
    %v1022 = vadd.f32 %v951, %v967
    %v1023 = vadd.f32 %v952, %v967
    %v1024 = vadd.f32 %v953, %v967
    %v1025 = vadd.f32 %v954, %v967
    %v1026 = vadd.f32 %v955, %v967
    %v1027 = vadd.f32 %v956, %v967
    %v1028 = vadd.f32 %v957, %v967
    %v1029 = vadd.f32 %v958, %v967
    %v1030 = vadd.f32 %v959, %v967
    %v1031 = vadd.f32 %v960, %v967
    %v1032 = vadd.f32 %v961, %v967
    %v1033 = vmax.f32 %v969, 0.0
    %v1034 = vmax.f32 %v970, 0.0
    %v1035 = vmax.f32 %v971, 0.0
    %v1036 = vmax.f32 %v972, 0.0
    %v1037 = vmax.f32 %v973, 0.0
    %v1038 = vmax.f32 %v974, 0.0
    %v1039 = vmax.f32 %v975, 0.0
    %v1040 = vmax.f32 %v976, 0.0
    %v1041 = vmax.f32 %v977, 0.0
    %v1042 = vmax.f32 %v978, 0.0
    %v1043 = vmax.f32 %v979, 0.0
    %v1044 = vmax.f32 %v980, 0.0
    %v1045 = vmax.f32 %v981, 0.0
    %v1046 = vmax.f32 %v982, 0.0
    %v1047 = vmax.f32 %v983, 0.0
    %v1048 = vmax.f32 %v984, 0.0
    %v1049 = vmax.f32 %v985, 0.0
    %v1050 = vmax.f32 %v986, 0.0
    %v1051 = vmax.f32 %v987, 0.0
    %v1052 = vmax.f32 %v988, 0.0
    %v1053 = vmax.f32 %v989, 0.0
    %v1054 = vmax.f32 %v990, 0.0
    %v1055 = vmax.f32 %v991, 0.0
    %v1056 = vmax.f32 %v992, 0.0
    %v1057 = vmax.f32 %v993, 0.0
    %v1058 = vmax.f32 %v994, 0.0
    %v1059 = vmax.f32 %v995, 0.0
    %v1060 = vmax.f32 %v996, 0.0
    %v1061 = vmax.f32 %v997, 0.0
    %v1062 = vmax.f32 %v998, 0.0
    %v1063 = vmax.f32 %v999, 0.0
    %v1064 = vmax.f32 %v1000, 0.0
    %v1065 = vmax.f32 %v1001, 0.0
    %v1066 = vmax.f32 %v1002, 0.0
    %v1067 = vmax.f32 %v1003, 0.0
    %v1068 = vmax.f32 %v1004, 0.0
    %v1069 = vmax.f32 %v1005, 0.0
    %v1070 = vmax.f32 %v1006, 0.0
    %v1071 = vmax.f32 %v1007, 0.0
    %v1072 = vmax.f32 %v1008, 0.0
    %v1073 = vmax.f32 %v1009, 0.0
    %v1074 = vmax.f32 %v1010, 0.0
    %v1075 = vmax.f32 %v1011, 0.0
    %v1076 = vmax.f32 %v1012, 0.0
    %v1077 = vmax.f32 %v1013, 0.0
    %v1078 = vmax.f32 %v1014, 0.0
    %v1079 = vmax.f32 %v1015, 0.0
    %v1080 = vmax.f32 %v1016, 0.0
    %v1081 = vmax.f32 %v1017, 0.0
    %v1082 = vmax.f32 %v1018, 0.0
    %v1083 = vmax.f32 %v1019, 0.0
    %v1084 = vmax.f32 %v1020, 0.0
    %v1085 = vmax.f32 %v1021, 0.0
    %v1086 = vmax.f32 %v1022, 0.0
    %v1087 = vmax.f32 %v1023, 0.0
    %v1088 = vmax.f32 %v1024, 0.0
    %v1089 = vmax.f32 %v1025, 0.0
    %v1090 = vmax.f32 %v1026, 0.0
    %v1091 = vmax.f32 %v1027, 0.0
    %v1092 = vmax.f32 %v1028, 0.0
    %v1093 = vmax.f32 %v1029, 0.0
    %v1094 = vmax.f32 %v1030, 0.0
    %v1095 = vmax.f32 %v1031, 0.0
    %v1096 = vmax.f32 %v1032, 0.0
    %v1097 = vpack.c.bf16 %v1034, %v1033
    %v1098 = vpack.c.bf16 %v1036, %v1035
    %v1099 = vpack.c.bf16 %v1038, %v1037
    %v1100 = vpack.c.bf16 %v1040, %v1039
    %v1101 = vpack.c.bf16 %v1042, %v1041
    %v1102 = vpack.c.bf16 %v1044, %v1043
    %v1103 = vpack.c.bf16 %v1046, %v1045
    %v1104 = vpack.c.bf16 %v1048, %v1047
    %v1105 = vpack.c.bf16 %v1050, %v1049
    %v1106 = vpack.c.bf16 %v1052, %v1051
    %v1107 = vpack.c.bf16 %v1054, %v1053
    %v1108 = vpack.c.bf16 %v1056, %v1055
    %v1109 = vpack.c.bf16 %v1058, %v1057
    %v1110 = vpack.c.bf16 %v1060, %v1059
    %v1111 = vpack.c.bf16 %v1062, %v1061
    %v1112 = vpack.c.bf16 %v1064, %v1063
    %v1113 = vpack.c.bf16 %v1066, %v1065
    %v1114 = vpack.c.bf16 %v1068, %v1067
    %v1115 = vpack.c.bf16 %v1070, %v1069
    %v1116 = vpack.c.bf16 %v1072, %v1071
    %v1117 = vpack.c.bf16 %v1074, %v1073
    %v1118 = vpack.c.bf16 %v1076, %v1075
    %v1119 = vpack.c.bf16 %v1078, %v1077
    %v1120 = vpack.c.bf16 %v1080, %v1079
    %v1121 = vpack.c.bf16 %v1082, %v1081
    %v1122 = vpack.c.bf16 %v1084, %v1083
    %v1123 = vpack.c.bf16 %v1086, %v1085
    %v1124 = vpack.c.bf16 %v1088, %v1087
    %v1125 = vpack.c.bf16 %v1090, %v1089
    %v1126 = vpack.c.bf16 %v1092, %v1091
    %v1127 = vpack.c.bf16 %v1094, %v1093
    %v1128 = vpack.c.bf16 %v1096, %v1095
    %v1161 = vunpack.c.l.b16 %v1097
    %v1162 = vunpack.c.h.b16 %v1097
    %v1163 = vunpack.c.l.b16 %v1098
    %v1164 = vunpack.c.h.b16 %v1098
    %v1165 = vunpack.c.l.b16 %v1099
    %v1166 = vunpack.c.h.b16 %v1099
    %v1167 = vunpack.c.l.b16 %v1100
    %v1168 = vunpack.c.h.b16 %v1100
    %v1169 = vunpack.c.l.b16 %v1101
    %v1170 = vunpack.c.h.b16 %v1101
    %v1171 = vunpack.c.l.b16 %v1102
    %v1172 = vunpack.c.h.b16 %v1102
    %v1173 = vunpack.c.l.b16 %v1103
    %v1174 = vunpack.c.h.b16 %v1103
    %v1175 = vunpack.c.l.b16 %v1104
    %v1176 = vunpack.c.h.b16 %v1104
    %v1177 = vunpack.c.l.b16 %v1105
    %v1178 = vunpack.c.h.b16 %v1105
    %v1179 = vunpack.c.l.b16 %v1106
    %v1180 = vunpack.c.h.b16 %v1106
    %v1181 = vunpack.c.l.b16 %v1107
    %v1182 = vunpack.c.h.b16 %v1107
    %v1183 = vunpack.c.l.b16 %v1108
    %v1184 = vunpack.c.h.b16 %v1108
    %v1185 = vunpack.c.l.b16 %v1109
    %v1186 = vunpack.c.h.b16 %v1109
    %v1187 = vunpack.c.l.b16 %v1110
    %v1188 = vunpack.c.h.b16 %v1110
    %v1189 = vunpack.c.l.b16 %v1111
    %v1190 = vunpack.c.h.b16 %v1111
    %v1191 = vunpack.c.l.b16 %v1112
    %v1192 = vunpack.c.h.b16 %v1112
    %v1193 = vunpack.c.l.b16 %v1113
    %v1194 = vunpack.c.h.b16 %v1113
    %v1195 = vunpack.c.l.b16 %v1114
    %v1196 = vunpack.c.h.b16 %v1114
    %v1197 = vunpack.c.l.b16 %v1115
    %v1198 = vunpack.c.h.b16 %v1115
    %v1199 = vunpack.c.l.b16 %v1116
    %v1200 = vunpack.c.h.b16 %v1116
    %v1201 = vunpack.c.l.b16 %v1117
    %v1202 = vunpack.c.h.b16 %v1117
    %v1203 = vunpack.c.l.b16 %v1118
    %v1204 = vunpack.c.h.b16 %v1118
    %v1205 = vunpack.c.l.b16 %v1119
    %v1206 = vunpack.c.h.b16 %v1119
    %v1207 = vunpack.c.l.b16 %v1120
    %v1208 = vunpack.c.h.b16 %v1120
    %v1209 = vunpack.c.l.b16 %v1121
    %v1210 = vunpack.c.h.b16 %v1121
    %v1211 = vunpack.c.l.b16 %v1122
    %v1212 = vunpack.c.h.b16 %v1122
    %v1213 = vunpack.c.l.b16 %v1123
    %v1214 = vunpack.c.h.b16 %v1123
    %v1215 = vunpack.c.l.b16 %v1124
    %v1216 = vunpack.c.h.b16 %v1124
    %v1217 = vunpack.c.l.b16 %v1125
    %v1218 = vunpack.c.h.b16 %v1125
    %v1219 = vunpack.c.l.b16 %v1126
    %v1220 = vunpack.c.h.b16 %v1126
    %v1221 = vunpack.c.l.b16 %v1127
    %v1222 = vunpack.c.h.b16 %v1127
    %v1223 = vunpack.c.l.b16 %v1128
    %v1224 = vunpack.c.h.b16 %v1128
    %v1225 = vpack.c.b16 %v1161, %v1161
    %v1226 = vpack.c.b16 %v1162, %v1162
    %v1227 = vpack.c.b16 %v1163, %v1163
    %v1228 = vpack.c.b16 %v1164, %v1164
    %v1229 = vpack.c.b16 %v1165, %v1165
    %v1230 = vpack.c.b16 %v1166, %v1166
    %v1231 = vpack.c.b16 %v1167, %v1167
    %v1232 = vpack.c.b16 %v1168, %v1168
    %v1233 = vpack.c.b16 %v1169, %v1169
    %v1234 = vpack.c.b16 %v1170, %v1170
    %v1235 = vpack.c.b16 %v1171, %v1171
    %v1236 = vpack.c.b16 %v1172, %v1172
    %v1237 = vpack.c.b16 %v1173, %v1173
    %v1238 = vpack.c.b16 %v1174, %v1174
    %v1239 = vpack.c.b16 %v1175, %v1175
    %v1240 = vpack.c.b16 %v1176, %v1176
    %v1241 = vpack.c.b16 %v1177, %v1177
    %v1242 = vpack.c.b16 %v1178, %v1178
    %v1243 = vpack.c.b16 %v1179, %v1179
    %v1244 = vpack.c.b16 %v1180, %v1180
    %v1245 = vpack.c.b16 %v1181, %v1181
    %v1246 = vpack.c.b16 %v1182, %v1182
    %v1247 = vpack.c.b16 %v1183, %v1183
    %v1248 = vpack.c.b16 %v1184, %v1184
    %v1249 = vpack.c.b16 %v1185, %v1185
    %v1250 = vpack.c.b16 %v1186, %v1186
    %v1251 = vpack.c.b16 %v1187, %v1187
    %v1252 = vpack.c.b16 %v1188, %v1188
    %v1253 = vpack.c.b16 %v1189, %v1189
    %v1254 = vpack.c.b16 %v1190, %v1190
    %v1255 = vpack.c.b16 %v1191, %v1191
    %v1256 = vpack.c.b16 %v1192, %v1192
    %v1257 = vpack.c.b16 %v1193, %v1193
    %v1258 = vpack.c.b16 %v1194, %v1194
    %v1259 = vpack.c.b16 %v1195, %v1195
    %v1260 = vpack.c.b16 %v1196, %v1196
    %v1261 = vpack.c.b16 %v1197, %v1197
    %v1262 = vpack.c.b16 %v1198, %v1198
    %v1263 = vpack.c.b16 %v1199, %v1199
    %v1264 = vpack.c.b16 %v1200, %v1200
    %v1265 = vpack.c.b16 %v1201, %v1201
    %v1266 = vpack.c.b16 %v1202, %v1202
    %v1267 = vpack.c.b16 %v1203, %v1203
    %v1268 = vpack.c.b16 %v1204, %v1204
    %v1269 = vpack.c.b16 %v1205, %v1205
    %v1270 = vpack.c.b16 %v1206, %v1206
    %v1271 = vpack.c.b16 %v1207, %v1207
    %v1272 = vpack.c.b16 %v1208, %v1208
    %v1273 = vpack.c.b16 %v1209, %v1209
    %v1274 = vpack.c.b16 %v1210, %v1210
    %v1275 = vpack.c.b16 %v1211, %v1211
    %v1276 = vpack.c.b16 %v1212, %v1212
    %v1277 = vpack.c.b16 %v1213, %v1213
    %v1278 = vpack.c.b16 %v1214, %v1214
    %v1279 = vpack.c.b16 %v1215, %v1215
    %v1280 = vpack.c.b16 %v1216, %v1216
    %v1281 = vpack.c.b16 %v1217, %v1217
    %v1282 = vpack.c.b16 %v1218, %v1218
    %v1283 = vpack.c.b16 %v1219, %v1219
    %v1284 = vpack.c.b16 %v1220, %v1220
    %v1285 = vpack.c.b16 %v1221, %v1221
    %v1286 = vpack.c.b16 %v1222, %v1222
    %v1287 = vpack.c.b16 %v1223, %v1223
    %v1288 = vpack.c.b16 %v1224, %v1224
    %vm1353 = vcmask 519168
    %1354 = vst.msk [vmem:[#allocation10] sm:$0xf] %vm1353, %v1225
    %1355 = vst.msk [vmem:[#allocation10 + $0x4] sm:$0xf] %vm1353, %v1226
    %1356 = vst.msk [vmem:[#allocation10 + $0x8] sm:$0xf] %vm1353, %v1227
    %1357 = vst.msk [vmem:[#allocation10 + $0xc] sm:$0xf] %vm1353, %v1228
    %1358 = vst.msk [vmem:[#allocation10 + $0x10] sm:$0xf] %vm1353, %v1229
    %1359 = vst.msk [vmem:[#allocation10 + $0x14] sm:$0xf] %vm1353, %v1230
    %1360 = vst.msk [vmem:[#allocation10 + $0x18] sm:$0xf] %vm1353, %v1231
    %1361 = vst.msk [vmem:[#allocation10 + $0x1c] sm:$0xf] %vm1353, %v1232
    %1362 = vst.msk [vmem:[#allocation10 + $0x20] sm:$0xf] %vm1353, %v1233
    %1363 = vst.msk [vmem:[#allocation10 + $0x24] sm:$0xf] %vm1353, %v1234
    %1364 = vst.msk [vmem:[#allocation10 + $0x28] sm:$0xf] %vm1353, %v1235
    %1365 = vst.msk [vmem:[#allocation10 + $0x2c] sm:$0xf] %vm1353, %v1236
    %1366 = vst.msk [vmem:[#allocation10 + $0x30] sm:$0xf] %vm1353, %v1237
    %1367 = vst.msk [vmem:[#allocation10 + $0x34] sm:$0xf] %vm1353, %v1238
    %1368 = vst.msk [vmem:[#allocation10 + $0x38] sm:$0xf] %vm1353, %v1239
    %1369 = vst.msk [vmem:[#allocation10 + $0x3c] sm:$0xf] %vm1353, %v1240
    %1370 = vst.msk [vmem:[#allocation10 + $0x40] sm:$0xf] %vm1353, %v1241
    %1371 = vst.msk [vmem:[#allocation10 + $0x44] sm:$0xf] %vm1353, %v1242
    %1372 = vst.msk [vmem:[#allocation10 + $0x48] sm:$0xf] %vm1353, %v1243
    %1373 = vst.msk [vmem:[#allocation10 + $0x4c] sm:$0xf] %vm1353, %v1244
    %1374 = vst.msk [vmem:[#allocation10 + $0x50] sm:$0xf] %vm1353, %v1245
    %1375 = vst.msk [vmem:[#allocation10 + $0x54] sm:$0xf] %vm1353, %v1246
    %1376 = vst.msk [vmem:[#allocation10 + $0x58] sm:$0xf] %vm1353, %v1247
    %1377 = vst.msk [vmem:[#allocation10 + $0x5c] sm:$0xf] %vm1353, %v1248
    %1378 = vst.msk [vmem:[#allocation10 + $0x60] sm:$0xf] %vm1353, %v1249
    %1379 = vst.msk [vmem:[#allocation10 + $0x64] sm:$0xf] %vm1353, %v1250
    %1380 = vst.msk [vmem:[#allocation10 + $0x68] sm:$0xf] %vm1353, %v1251
    %1381 = vst.msk [vmem:[#allocation10 + $0x6c] sm:$0xf] %vm1353, %v1252
    %1382 = vst.msk [vmem:[#allocation10 + $0x70] sm:$0xf] %vm1353, %v1253
    %1383 = vst.msk [vmem:[#allocation10 + $0x74] sm:$0xf] %vm1353, %v1254
    %1384 = vst.msk [vmem:[#allocation10 + $0x78] sm:$0xf] %vm1353, %v1255
    %1385 = vst.msk [vmem:[#allocation10 + $0x7c] sm:$0xf] %vm1353, %v1256
    %1386 = vst.msk [vmem:[#allocation10 + $0x80] sm:$0xf] %vm1353, %v1257
    %1387 = vst.msk [vmem:[#allocation10 + $0x84] sm:$0xf] %vm1353, %v1258
    %1388 = vst.msk [vmem:[#allocation10 + $0x88] sm:$0xf] %vm1353, %v1259
    %1389 = vst.msk [vmem:[#allocation10 + $0x8c] sm:$0xf] %vm1353, %v1260
    %1390 = vst.msk [vmem:[#allocation10 + $0x90] sm:$0xf] %vm1353, %v1261
    %1391 = vst.msk [vmem:[#allocation10 + $0x94] sm:$0xf] %vm1353, %v1262
    %1392 = vst.msk [vmem:[#allocation10 + $0x98] sm:$0xf] %vm1353, %v1263
    %1393 = vst.msk [vmem:[#allocation10 + $0x9c] sm:$0xf] %vm1353, %v1264
    %1394 = vst.msk [vmem:[#allocation10 + $0xa0] sm:$0xf] %vm1353, %v1265
    %1395 = vst.msk [vmem:[#allocation10 + $0xa4] sm:$0xf] %vm1353, %v1266
    %1396 = vst.msk [vmem:[#allocation10 + $0xa8] sm:$0xf] %vm1353, %v1267
    %1397 = vst.msk [vmem:[#allocation10 + $0xac] sm:$0xf] %vm1353, %v1268
    %1398 = vst.msk [vmem:[#allocation10 + $0xb0] sm:$0xf] %vm1353, %v1269
    %1399 = vst.msk [vmem:[#allocation10 + $0xb4] sm:$0xf] %vm1353, %v1270
    %1400 = vst.msk [vmem:[#allocation10 + $0xb8] sm:$0xf] %vm1353, %v1271
    %1401 = vst.msk [vmem:[#allocation10 + $0xbc] sm:$0xf] %vm1353, %v1272
    %1402 = vst.msk [vmem:[#allocation10 + $0xc0] sm:$0xf] %vm1353, %v1273
    %1403 = vst.msk [vmem:[#allocation10 + $0xc4] sm:$0xf] %vm1353, %v1274
    %1404 = vst.msk [vmem:[#allocation10 + $0xc8] sm:$0xf] %vm1353, %v1275
    %1405 = vst.msk [vmem:[#allocation10 + $0xcc] sm:$0xf] %vm1353, %v1276
    %1406 = vst.msk [vmem:[#allocation10 + $0xd0] sm:$0xf] %vm1353, %v1277
    %1407 = vst.msk [vmem:[#allocation10 + $0xd4] sm:$0xf] %vm1353, %v1278
    %1408 = vst.msk [vmem:[#allocation10 + $0xd8] sm:$0xf] %vm1353, %v1279
    %1409 = vst.msk [vmem:[#allocation10 + $0xdc] sm:$0xf] %vm1353, %v1280
    %1410 = vst.msk [vmem:[#allocation10 + $0xe0] sm:$0xf] %vm1353, %v1281
    %1411 = vst.msk [vmem:[#allocation10 + $0xe4] sm:$0xf] %vm1353, %v1282
    %1412 = vst.msk [vmem:[#allocation10 + $0xe8] sm:$0xf] %vm1353, %v1283
    %1413 = vst.msk [vmem:[#allocation10 + $0xec] sm:$0xf] %vm1353, %v1284
    %1414 = vst.msk [vmem:[#allocation10 + $0xf0] sm:$0xf] %vm1353, %v1285
    %1415 = vst.msk [vmem:[#allocation10 + $0xf4] sm:$0xf] %vm1353, %v1286
    %1416 = vst.msk [vmem:[#allocation10 + $0xf8] sm:$0xf] %vm1353, %v1287
    %1417 = vst.msk [vmem:[#allocation10 + $0xfc] sm:$0xf] %vm1353, %v1288
    // Predicated region
    $region34: #{_matmul_affine.1} parent=1 // pred_check
      _
    $region35: #{_matmul_affine.1} parent=1 // pred_check_branch
      %1419 = sbr.rel (0) target = $region37
    $region36: #{_matmul_affine.1} parent=1 // pred_region
      %s1421 = ssub.s32 4096, 4096
      %1422 = vsyncadd [#allocation4], %s1421
      %s1423 = sshll.u32 [#allocation10], 4
      %s1424 = int_to_ptr.vmem [resolvable:$true] %s1423
      %1429 = dma.vmem_to_hbm [thread:$0]  %s1424, 4096, %s4, [#allocation4], 64, 64, 4
    $region37: #{_matmul_affine.1} parent=1 // pred_fallthru
      _
    // Predicated region
    $region38: #{_matmul_affine.1} parent=1 // pred_check
      _
    $region39: #{_matmul_affine.1} parent=1 // pred_check_branch
      %1431 = sbr.rel (0) target = $region41
    $region40: #{_matmul_affine.1} parent=1 // pred_region
      %1432 = dma.done [#allocation4], 4096
    $region41: #{_matmul_affine.1} parent=1 // pred_fallthru
      _
    %1433 = vsyncpa [#allocation3], 1
    %1434 = vsyncpa [#allocation6], 1
    %1435 = vsyncpa [#allocation9], 1
    %1436 = vsyncpa [#allocation4], 1

</llo_original>
